<compile_context>
chip_gen: v7x
topology: tpu7x:2x2x1
jax: 0.10.0
libtpu: 0.0.40
codegen_flags: <defaults>
</compile_context>

<pallas_src>
import functools
import math

import jax
import jax.numpy as jnp
from jax import lax
from jax.experimental import pallas as pl
from jax.experimental.pallas import tpu as pltpu

LN_EPS = 1e-5  # torch.nn.LayerNorm default
_INV_SQRT2 = 1.0 / math.sqrt(2.0)


def _round_up(n, m):
    return ((n + m - 1) // m) * m


def _pad_to(a, shape):
    return jnp.pad(a, [(0, t - s) for s, t in zip(a.shape, shape)])


def _vmem_capacity_bytes():
    """Per-core VMEM capacity; conservative fallback if the query is unavailable."""
    try:
        info = pltpu.get_tpu_info()
        cap = getattr(info, "vmem_capacity_bytes", None)
        if cap:
            return int(cap)
    except Exception:
        pass
    return 64 * 1024 * 1024  # v7x per-TensorCore VMEM (smallest of the targets)


def _choose_tb(batch):
    """Batch tile: multiple of 8, >=2 grid steps when the batch allows it
    (megacore sharding on v7x), minimal padded rows for large batches."""
    b8 = _round_up(max(batch, 8), 8)
    if b8 <= 512:
        # Split into two equal tiles when that costs no extra padding.
        if b8 >= 16 and (b8 // 2) % 8 == 0:
            return b8 // 2
        return b8
    best_tb, best_key = None, None
    for tb in (512, 256, 128, 64):
        pad = _round_up(b8, tb) - b8
        key = (pad, -tb)  # minimise padding, prefer bigger tiles on ties
        if best_key is None or key < best_key:
            best_tb, best_key = tb, key
    return best_tb


def mlp_encoder_kernel(hidden_dim, x_ref, w0_ref, w1_ref, w2_ref, w3_ref,
                       w4_ref, vec_ref, o_ref):
    """One batch tile: x (TB, D_pad) f32 -> o (TB, OUT_pad) f32.

    Weights are bf16; matmuls use bf16 operands with f32 accumulation.
    hidden_dim is the REAL (unpadded) hidden width, used for LN statistics.
    Padded lanes of every activation are exactly zero (zero-padded weights,
    biases, gammas and GELU(0) = 0), so plain sums give exact statistics and
    padded output lanes stay zero.
    """
    h_pad = w0_ref.shape[1]
    o_pad = w4_ref.shape[1]

    vecs = vec_ref[...]  # (16, P_max) packed biases / LN params, f32
    inv_h = jnp.float32(1.0 / hidden_dim)

    def gelu(v):
        # torch.nn.GELU() default (approximate='none'): 0.5*x*(1+erf(x/sqrt(2)))
        return 0.5 * v * (1.0 + lax.erf(v * _INV_SQRT2))

    def layernorm(v, gamma, beta):
        # E[x^2] - mu^2 form: sums are independent (overlap on the XLU) and no
        # lane mask is needed since padded lanes of v are exactly zero.
        mu = jnp.sum(v, axis=-1, keepdims=True) * inv_h
        ex2 = jnp.sum(v * v, axis=-1, keepdims=True) * inv_h
        var = ex2 - mu * mu
        # gamma/beta are zero on padded lanes -> output padded lanes stay zero.
        return (v - mu) * lax.rsqrt(var + LN_EPS) * gamma + beta

    def matmul(a_f32, w_ref):
        # bf16 x bf16 -> f32 accumulate (native MXU rate on all generations).
        return jnp.dot(a_f32.astype(jnp.bfloat16), w_ref[...],
                       preferred_element_type=jnp.float32)

    # Packed vector rows: 0:b0, (1,2,3):(g1,be1,b1), (4,5,6):(g2,be2,b2),
    # (7,8,9):(g3,be3,b3), 10:b4.
    b0 = vecs[0:1, :h_pad]
    h = gelu(matmul(x_ref[...], w0_ref) + b0)

    for idx, w_ref in ((1, w1_ref), (4, w2_ref), (7, w3_ref)):
        g = vecs[idx:idx + 1, :h_pad]
        be = vecs[idx + 1:idx + 2, :h_pad]
        b = vecs[idx + 2:idx + 3, :h_pad]
        h = gelu(matmul(layernorm(h, g, be), w_ref) + b)

    b4 = vecs[10:11, :o_pad]
    o_ref[...] = (matmul(h, w4_ref) + b4).astype(o_ref.dtype)


def init_params(key, input_dim, hidden_dim, output_dim):
    """Deterministic synthetic parameters (PyTorch-like uniform fan-in init)."""
    def linear(k, fan_in, fan_out):
        k1, k2 = jax.random.split(k)
        bound = 1.0 / math.sqrt(fan_in)
        w = jax.random.uniform(k1, (fan_in, fan_out), jnp.float32, -bound, bound)
        b = jax.random.uniform(k2, (1, fan_out), jnp.float32, -bound, bound)
        return w, b

    keys = jax.random.split(key, 5)
    params = {}
    params["w0"], params["b0"] = linear(keys[0], input_dim, hidden_dim)
    for i in (1, 2, 3):
        params[f"g{i}"] = jnp.ones((1, hidden_dim), jnp.float32)    # LN weight
        params[f"be{i}"] = jnp.zeros((1, hidden_dim), jnp.float32)  # LN bias
        params[f"w{i}"], params[f"b{i}"] = linear(keys[i], hidden_dim, hidden_dim)
    params["w4"], params["b4"] = linear(keys[4], hidden_dim, output_dim)
    return params


@functools.partial(jax.jit, static_argnums=(2,))
def _forward_impl(x, params, single_buffer_weights):
    """x: (batch, 1, input_dim) -> (batch, 1, output_dim)"""
    B, one, D = x.shape
    assert one == 1
    H = params["w0"].shape[1]
    OUT = params["w4"].shape[1]

    # Lane-pad every feature axis to a multiple of 128.
    D_pad = _round_up(D, 128)
    H_pad = _round_up(H, 128)
    O_pad = _round_up(OUT, 128)
    P_max = max(H_pad, O_pad)

    TB = _choose_tb(B)
    B_pad = _round_up(max(B, 8), TB)

    x2d = _pad_to(x.reshape(B, D).astype(jnp.float32), (B_pad, D_pad))

    # Zero-padded bf16 weights (padded rows/cols contribute nothing; 0 -> 0 in bf16).
    w0 = _pad_to(params["w0"].astype(jnp.bfloat16), (D_pad, H_pad))
    w1 = _pad_to(params["w1"].astype(jnp.bfloat16), (H_pad, H_pad))
    w2 = _pad_to(params["w2"].astype(jnp.bfloat16), (H_pad, H_pad))
    w3 = _pad_to(params["w3"].astype(jnp.bfloat16), (H_pad, H_pad))
    w4 = _pad_to(params["w4"].astype(jnp.bfloat16), (H_pad, O_pad))

    vec_rows = [
        params["b0"],
        params["g1"], params["be1"], params["b1"],
        params["g2"], params["be2"], params["b2"],
        params["g3"], params["be3"], params["b3"],
        params["b4"],
    ]
    vecs = jnp.concatenate([_pad_to(v, (1, P_max)) for v in vec_rows], axis=0)
    vecs = _pad_to(vecs, (16, P_max))  # sublane-align the stacked vector block (f32)

    # Generation-aware VMEM budget (matches the buffering actually requested).
    bf16_w_bytes = 2 * (w0.size + w1.size + w2.size + w3.size + w4.size)
    vec_bytes = 4 * vecs.size
    wt_buf = 1 if single_buffer_weights else 2
    need = (wt_buf * (bf16_w_bytes + vec_bytes)      # resident weights / vectors
            + 2 * 4 * TB * (D_pad + O_pad)           # double-buffered x / out tiles
            + 8 * 4 * TB * H_pad                     # activation / temp headroom
            + (2 << 20))                             # slack
    vmem_cap = _vmem_capacity_bytes()
    vmem_limit = int(min(max(need, 32 << 20), vmem_cap - (4 << 20)))

    def const_spec(shape):
        # Constant index_map -> one buffer is enough (halves weight residency).
        if single_buffer_weights:
            return pl.BlockSpec(shape, lambda i: (0, 0),
                                pipeline_mode=pl.Buffered(1))
        return pl.BlockSpec(shape, lambda i: (0, 0))

    grid = (B_pad // TB,)
    kernel = functools.partial(mlp_encoder_kernel, H)

    cost = pl.CostEstimate(
        flops=2 * B * (D * H + 3 * H * H + H * OUT),
        transcendentals=4 * B * H,  # erf per GELU
        bytes_accessed=(2 * (D * H + 3 * H * H + H * OUT)   # bf16 weights
                        + 4 * (B * D + B * OUT + 13 * H)),  # f32 x/out/vectors
    )

    out2d = pl.pallas_call(
        kernel,
        out_shape=jax.ShapeDtypeStruct((B_pad, O_pad), jnp.float32),
        grid=grid,
        in_specs=[
            pl.BlockSpec((TB, D_pad), lambda i: (i, 0)),  # x: streamed per tile
            const_spec((D_pad, H_pad)),                   # weights: resident
            const_spec((H_pad, H_pad)),
            const_spec((H_pad, H_pad)),
            const_spec((H_pad, H_pad)),
            const_spec((H_pad, O_pad)),
            const_spec((16, P_max)),                      # packed bias/LN vectors
        ],
        out_specs=pl.BlockSpec((TB, O_pad), lambda i: (i, 0)),
        compiler_params=pltpu.CompilerParams(
            dimension_semantics=("parallel",),
            vmem_limit_bytes=vmem_limit,
        ),
        cost_estimate=cost,
    )(x2d, w0, w1, w2, w3, w4, vecs)

    return out2d[:B, :OUT].reshape(B, 1, OUT)


def mlp_encoder_forward(x, params):
    try:
        return jax.block_until_ready(_forward_impl(x, params, True))
    except Exception:
        # pipeline_mode / single-buffered resident specs unsupported on this
        # JAX build -> fall back to default double-buffered weight specs.
        return jax.block_until_ready(_forward_impl(x, params, False))


def _reference_forward(x, params):
    """Pure-JAX reference mirroring the module with the kernel's precision
    choices (bf16 matmul operands, f32 accumulation / LN / exact-erf GELU)."""
    def mm(a, w):
        return jnp.dot(a.astype(jnp.bfloat16), w.astype(jnp.bfloat16),
                       preferred_element_type=jnp.float32)

    def gelu(v):
        return 0.5 * v * (1.0 + lax.erf(v * _INV_SQRT2))

    def layernorm(v, gamma, beta):
        mu = jnp.mean(v, axis=-1, keepdims=True)
        var = jnp.mean(jnp.square(v - mu), axis=-1, keepdims=True)
        return (v - mu) * lax.rsqrt(var + LN_EPS) * gamma + beta

    h = x.reshape(x.shape[0], -1).astype(jnp.float32)
    h = gelu(mm(h, params["w0"]) + params["b0"])
    for i in (1, 2, 3):
        h = layernorm(h, params[f"g{i}"], params[f"be{i}"])
        h = gelu(mm(h, params[f"w{i}"]) + params[f"b{i}"])
    h = mm(h, params["w4"]) + params["b4"]
    return h.reshape(x.shape[0], 1, -1)


if __name__ == "__main__":
    batch, input_dim, hidden_dim, output_dim = 8, 16, 32, 8

    key = jax.random.PRNGKey(0)
    kx, kp = jax.random.split(key)
    x = jax.random.normal(kx, (batch, 1, input_dim), jnp.float32)
    params = init_params(kp, input_dim, hidden_dim, output_dim)

    out = mlp_encoder_forward(x, params)
    out = jax.block_until_ready(out)

    ref = _reference_forward(x, params)
    assert out.shape == (batch, 1, output_dim)
    assert jnp.allclose(out, ref, atol=1e-3, rtol=1e-3), (
        float(jnp.max(jnp.abs(out - ref))))

    print("KERNEL_OK")
</pallas_src>

<mosaic_0001>
module attributes {stable_mosaic.version = 11 : i64} {
  func.func @mlp_encoder_kernel(%arg0: i32, %arg1: memref<8x128xf32, #tpu.memory_space<vmem>>, %arg2: memref<128x128xbf16, #tpu.memory_space<vmem>>, %arg3: memref<128x128xbf16, #tpu.memory_space<vmem>>, %arg4: memref<128x128xbf16, #tpu.memory_space<vmem>>, %arg5: memref<128x128xbf16, #tpu.memory_space<vmem>>, %arg6: memref<128x128xbf16, #tpu.memory_space<vmem>>, %arg7: memref<16x128xf32, #tpu.memory_space<vmem>>, %arg8: memref<8x128xf32, #tpu.memory_space<vmem>>) attributes {dimension_semantics = [#tpu.dimension_semantics<parallel>], iteration_bounds = array<i64: 1>, scalar_prefetch = 0 : i64, scratch_operands = 0 : i64, tpu.core_type = #tpu.core_type<tc>, window_params = [{transform_indices = @transform_0, window_bounds = array<i64: 8, 128>}, {pipeline_mode = #tpu.pipeline_mode<synchronous>, transform_indices = @transform_1, window_bounds = array<i64: 128, 128>}, {pipeline_mode = #tpu.pipeline_mode<synchronous>, transform_indices = @transform_2, window_bounds = array<i64: 128, 128>}, {pipeline_mode = #tpu.pipeline_mode<synchronous>, transform_indices = @transform_3, window_bounds = array<i64: 128, 128>}, {pipeline_mode = #tpu.pipeline_mode<synchronous>, transform_indices = @transform_4, window_bounds = array<i64: 128, 128>}, {pipeline_mode = #tpu.pipeline_mode<synchronous>, transform_indices = @transform_5, window_bounds = array<i64: 128, 128>}, {pipeline_mode = #tpu.pipeline_mode<synchronous>, transform_indices = @transform_6, window_bounds = array<i64: 16, 128>}, {transform_indices = @transform_7, window_bounds = array<i64: 8, 128>}]} {
    %c0 = arith.constant 0 : index
    %c0_0 = arith.constant 0 : index
    %0 = vector.load %arg7[%c0, %c0_0] : memref<16x128xf32, #tpu.memory_space<vmem>>, vector<16x128xf32>
    %1 = vector.extract_strided_slice %0 {offsets = [0, 0], sizes = [1, 128], strides = [1, 1]} : vector<16x128xf32> to vector<1x128xf32>
    %c0_1 = arith.constant 0 : index
    %c0_2 = arith.constant 0 : index
    %2 = vector.load %arg1[%c0_1, %c0_2] : memref<8x128xf32, #tpu.memory_space<vmem>>, vector<8x128xf32>
    %3 = arith.truncf %2 : vector<8x128xf32> to vector<8x128xbf16>
    %c0_3 = arith.constant 0 : index
    %c0_4 = arith.constant 0 : index
    %4 = vector.load %arg2[%c0_3, %c0_4] : memref<128x128xbf16, #tpu.memory_space<vmem>>, vector<128x128xbf16>
    %cst = arith.constant dense<0.000000e+00> : vector<8x128xf32>
    %5 = tpu.matmul %3, %4, %cst {dimension_numbers = #tpu.dot_dimension_numbers<[1], [0], [0], [1], [0, 0, 1, 1], [], []>} : vector<8x128xbf16>, vector<128x128xbf16>, vector<8x128xf32> -> vector<8x128xf32>
    %6 = vector.broadcast %1 : vector<1x128xf32> to vector<8x128xf32>
    %7 = arith.addf %5, %6 : vector<8x128xf32>
    %cst_5 = arith.constant 5.000000e-01 : f32
    %8 = vector.broadcast %cst_5 : f32 to vector<8x128xf32>
    %9 = arith.mulf %8, %7 : vector<8x128xf32>
    %cst_6 = arith.constant 0.707106769 : f32
    %10 = vector.broadcast %cst_6 : f32 to vector<8x128xf32>
    %11 = arith.mulf %7, %10 : vector<8x128xf32>
    %12 = math.erf %11 : vector<8x128xf32>
    %cst_7 = arith.constant 1.000000e+00 : f32
    %13 = vector.broadcast %cst_7 : f32 to vector<8x128xf32>
    %14 = arith.addf %13, %12 : vector<8x128xf32>
    %15 = arith.mulf %9, %14 : vector<8x128xf32>
    %16 = vector.extract_strided_slice %0 {offsets = [1, 0], sizes = [1, 128], strides = [1, 1]} : vector<16x128xf32> to vector<1x128xf32>
    %17 = vector.extract_strided_slice %0 {offsets = [2, 0], sizes = [1, 128], strides = [1, 1]} : vector<16x128xf32> to vector<1x128xf32>
    %18 = vector.extract_strided_slice %0 {offsets = [3, 0], sizes = [1, 128], strides = [1, 1]} : vector<16x128xf32> to vector<1x128xf32>
    %cst_8 = arith.constant dense<0.000000e+00> : vector<8xf32>
    %19 = vector.multi_reduction <add>, %15, %cst_8 [1] : vector<8x128xf32> to vector<8xf32>
    %20 = vector.shape_cast %19 : vector<8xf32> to vector<8x1xf32>
    %cst_9 = arith.constant 3.125000e-02 : f32
    %21 = vector.broadcast %cst_9 : f32 to vector<8x1xf32>
    %22 = arith.mulf %20, %21 : vector<8x1xf32>
    %23 = arith.mulf %15, %15 : vector<8x128xf32>
    %cst_10 = arith.constant dense<0.000000e+00> : vector<8xf32>
    %24 = vector.multi_reduction <add>, %23, %cst_10 [1] : vector<8x128xf32> to vector<8xf32>
    %25 = vector.shape_cast %24 : vector<8xf32> to vector<8x1xf32>
    %cst_11 = arith.constant 3.125000e-02 : f32
    %26 = vector.broadcast %cst_11 : f32 to vector<8x1xf32>
    %27 = arith.mulf %25, %26 : vector<8x1xf32>
    %28 = arith.mulf %22, %22 : vector<8x1xf32>
    %29 = arith.subf %27, %28 : vector<8x1xf32>
    %30 = vector.broadcast %22 : vector<8x1xf32> to vector<8x128xf32>
    %31 = arith.subf %15, %30 : vector<8x128xf32>
    %cst_12 = arith.constant 9.99999974E-6 : f32
    %32 = vector.broadcast %cst_12 : f32 to vector<8x1xf32>
    %33 = arith.addf %29, %32 : vector<8x1xf32>
    %34 = math.rsqrt %33 : vector<8x1xf32>
    %35 = vector.broadcast %34 : vector<8x1xf32> to vector<8x128xf32>
    %36 = arith.mulf %31, %35 : vector<8x128xf32>
    %37 = vector.broadcast %16 : vector<1x128xf32> to vector<8x128xf32>
    %38 = arith.mulf %36, %37 : vector<8x128xf32>
    %39 = vector.broadcast %17 : vector<1x128xf32> to vector<8x128xf32>
    %40 = arith.addf %38, %39 : vector<8x128xf32>
    %41 = arith.truncf %40 : vector<8x128xf32> to vector<8x128xbf16>
    %c0_13 = arith.constant 0 : index
    %c0_14 = arith.constant 0 : index
    %42 = vector.load %arg3[%c0_13, %c0_14] : memref<128x128xbf16, #tpu.memory_space<vmem>>, vector<128x128xbf16>
    %cst_15 = arith.constant dense<0.000000e+00> : vector<8x128xf32>
    %43 = tpu.matmul %41, %42, %cst_15 {dimension_numbers = #tpu.dot_dimension_numbers<[1], [0], [0], [1], [0, 0, 1, 1], [], []>} : vector<8x128xbf16>, vector<128x128xbf16>, vector<8x128xf32> -> vector<8x128xf32>
    %44 = vector.broadcast %18 : vector<1x128xf32> to vector<8x128xf32>
    %45 = arith.addf %43, %44 : vector<8x128xf32>
    %cst_16 = arith.constant 5.000000e-01 : f32
    %46 = vector.broadcast %cst_16 : f32 to vector<8x128xf32>
    %47 = arith.mulf %46, %45 : vector<8x128xf32>
    %cst_17 = arith.constant 0.707106769 : f32
    %48 = vector.broadcast %cst_17 : f32 to vector<8x128xf32>
    %49 = arith.mulf %45, %48 : vector<8x128xf32>
    %50 = math.erf %49 : vector<8x128xf32>
    %cst_18 = arith.constant 1.000000e+00 : f32
    %51 = vector.broadcast %cst_18 : f32 to vector<8x128xf32>
    %52 = arith.addf %51, %50 : vector<8x128xf32>
    %53 = arith.mulf %47, %52 : vector<8x128xf32>
    %54 = vector.extract_strided_slice %0 {offsets = [4, 0], sizes = [1, 128], strides = [1, 1]} : vector<16x128xf32> to vector<1x128xf32>
    %55 = vector.extract_strided_slice %0 {offsets = [5, 0], sizes = [1, 128], strides = [1, 1]} : vector<16x128xf32> to vector<1x128xf32>
    %56 = vector.extract_strided_slice %0 {offsets = [6, 0], sizes = [1, 128], strides = [1, 1]} : vector<16x128xf32> to vector<1x128xf32>
    %cst_19 = arith.constant dense<0.000000e+00> : vector<8xf32>
    %57 = vector.multi_reduction <add>, %53, %cst_19 [1] : vector<8x128xf32> to vector<8xf32>
    %58 = vector.shape_cast %57 : vector<8xf32> to vector<8x1xf32>
    %cst_20 = arith.constant 3.125000e-02 : f32
    %59 = vector.broadcast %cst_20 : f32 to vector<8x1xf32>
    %60 = arith.mulf %58, %59 : vector<8x1xf32>
    %61 = arith.mulf %53, %53 : vector<8x128xf32>
    %cst_21 = arith.constant dense<0.000000e+00> : vector<8xf32>
    %62 = vector.multi_reduction <add>, %61, %cst_21 [1] : vector<8x128xf32> to vector<8xf32>
    %63 = vector.shape_cast %62 : vector<8xf32> to vector<8x1xf32>
    %cst_22 = arith.constant 3.125000e-02 : f32
    %64 = vector.broadcast %cst_22 : f32 to vector<8x1xf32>
    %65 = arith.mulf %63, %64 : vector<8x1xf32>
    %66 = arith.mulf %60, %60 : vector<8x1xf32>
    %67 = arith.subf %65, %66 : vector<8x1xf32>
    %68 = vector.broadcast %60 : vector<8x1xf32> to vector<8x128xf32>
    %69 = arith.subf %53, %68 : vector<8x128xf32>
    %cst_23 = arith.constant 9.99999974E-6 : f32
    %70 = vector.broadcast %cst_23 : f32 to vector<8x1xf32>
    %71 = arith.addf %67, %70 : vector<8x1xf32>
    %72 = math.rsqrt %71 : vector<8x1xf32>
    %73 = vector.broadcast %72 : vector<8x1xf32> to vector<8x128xf32>
    %74 = arith.mulf %69, %73 : vector<8x128xf32>
    %75 = vector.broadcast %54 : vector<1x128xf32> to vector<8x128xf32>
    %76 = arith.mulf %74, %75 : vector<8x128xf32>
    %77 = vector.broadcast %55 : vector<1x128xf32> to vector<8x128xf32>
    %78 = arith.addf %76, %77 : vector<8x128xf32>
    %79 = arith.truncf %78 : vector<8x128xf32> to vector<8x128xbf16>
    %c0_24 = arith.constant 0 : index
    %c0_25 = arith.constant 0 : index
    %80 = vector.load %arg4[%c0_24, %c0_25] : memref<128x128xbf16, #tpu.memory_space<vmem>>, vector<128x128xbf16>
    %cst_26 = arith.constant dense<0.000000e+00> : vector<8x128xf32>
    %81 = tpu.matmul %79, %80, %cst_26 {dimension_numbers = #tpu.dot_dimension_numbers<[1], [0], [0], [1], [0, 0, 1, 1], [], []>} : vector<8x128xbf16>, vector<128x128xbf16>, vector<8x128xf32> -> vector<8x128xf32>
    %82 = vector.broadcast %56 : vector<1x128xf32> to vector<8x128xf32>
    %83 = arith.addf %81, %82 : vector<8x128xf32>
    %cst_27 = arith.constant 5.000000e-01 : f32
    %84 = vector.broadcast %cst_27 : f32 to vector<8x128xf32>
    %85 = arith.mulf %84, %83 : vector<8x128xf32>
    %cst_28 = arith.constant 0.707106769 : f32
    %86 = vector.broadcast %cst_28 : f32 to vector<8x128xf32>
    %87 = arith.mulf %83, %86 : vector<8x128xf32>
    %88 = math.erf %87 : vector<8x128xf32>
    %cst_29 = arith.constant 1.000000e+00 : f32
    %89 = vector.broadcast %cst_29 : f32 to vector<8x128xf32>
    %90 = arith.addf %89, %88 : vector<8x128xf32>
    %91 = arith.mulf %85, %90 : vector<8x128xf32>
    %92 = vector.extract_strided_slice %0 {offsets = [7, 0], sizes = [1, 128], strides = [1, 1]} : vector<16x128xf32> to vector<1x128xf32>
    %93 = vector.extract_strided_slice %0 {offsets = [8, 0], sizes = [1, 128], strides = [1, 1]} : vector<16x128xf32> to vector<1x128xf32>
    %94 = vector.extract_strided_slice %0 {offsets = [9, 0], sizes = [1, 128], strides = [1, 1]} : vector<16x128xf32> to vector<1x128xf32>
    %cst_30 = arith.constant dense<0.000000e+00> : vector<8xf32>
    %95 = vector.multi_reduction <add>, %91, %cst_30 [1] : vector<8x128xf32> to vector<8xf32>
    %96 = vector.shape_cast %95 : vector<8xf32> to vector<8x1xf32>
    %cst_31 = arith.constant 3.125000e-02 : f32
    %97 = vector.broadcast %cst_31 : f32 to vector<8x1xf32>
    %98 = arith.mulf %96, %97 : vector<8x1xf32>
    %99 = arith.mulf %91, %91 : vector<8x128xf32>
    %cst_32 = arith.constant dense<0.000000e+00> : vector<8xf32>
    %100 = vector.multi_reduction <add>, %99, %cst_32 [1] : vector<8x128xf32> to vector<8xf32>
    %101 = vector.shape_cast %100 : vector<8xf32> to vector<8x1xf32>
    %cst_33 = arith.constant 3.125000e-02 : f32
    %102 = vector.broadcast %cst_33 : f32 to vector<8x1xf32>
    %103 = arith.mulf %101, %102 : vector<8x1xf32>
    %104 = arith.mulf %98, %98 : vector<8x1xf32>
    %105 = arith.subf %103, %104 : vector<8x1xf32>
    %106 = vector.broadcast %98 : vector<8x1xf32> to vector<8x128xf32>
    %107 = arith.subf %91, %106 : vector<8x128xf32>
    %cst_34 = arith.constant 9.99999974E-6 : f32
    %108 = vector.broadcast %cst_34 : f32 to vector<8x1xf32>
    %109 = arith.addf %105, %108 : vector<8x1xf32>
    %110 = math.rsqrt %109 : vector<8x1xf32>
    %111 = vector.broadcast %110 : vector<8x1xf32> to vector<8x128xf32>
    %112 = arith.mulf %107, %111 : vector<8x128xf32>
    %113 = vector.broadcast %92 : vector<1x128xf32> to vector<8x128xf32>
    %114 = arith.mulf %112, %113 : vector<8x128xf32>
    %115 = vector.broadcast %93 : vector<1x128xf32> to vector<8x128xf32>
    %116 = arith.addf %114, %115 : vector<8x128xf32>
    %117 = arith.truncf %116 : vector<8x128xf32> to vector<8x128xbf16>
    %c0_35 = arith.constant 0 : index
    %c0_36 = arith.constant 0 : index
    %118 = vector.load %arg5[%c0_35, %c0_36] : memref<128x128xbf16, #tpu.memory_space<vmem>>, vector<128x128xbf16>
    %cst_37 = arith.constant dense<0.000000e+00> : vector<8x128xf32>
    %119 = tpu.matmul %117, %118, %cst_37 {dimension_numbers = #tpu.dot_dimension_numbers<[1], [0], [0], [1], [0, 0, 1, 1], [], []>} : vector<8x128xbf16>, vector<128x128xbf16>, vector<8x128xf32> -> vector<8x128xf32>
    %120 = vector.broadcast %94 : vector<1x128xf32> to vector<8x128xf32>
    %121 = arith.addf %119, %120 : vector<8x128xf32>
    %cst_38 = arith.constant 5.000000e-01 : f32
    %122 = vector.broadcast %cst_38 : f32 to vector<8x128xf32>
    %123 = arith.mulf %122, %121 : vector<8x128xf32>
    %cst_39 = arith.constant 0.707106769 : f32
    %124 = vector.broadcast %cst_39 : f32 to vector<8x128xf32>
    %125 = arith.mulf %121, %124 : vector<8x128xf32>
    %126 = math.erf %125 : vector<8x128xf32>
    %cst_40 = arith.constant 1.000000e+00 : f32
    %127 = vector.broadcast %cst_40 : f32 to vector<8x128xf32>
    %128 = arith.addf %127, %126 : vector<8x128xf32>
    %129 = arith.mulf %123, %128 : vector<8x128xf32>
    %130 = vector.extract_strided_slice %0 {offsets = [10, 0], sizes = [1, 128], strides = [1, 1]} : vector<16x128xf32> to vector<1x128xf32>
    %131 = arith.truncf %129 : vector<8x128xf32> to vector<8x128xbf16>
    %c0_41 = arith.constant 0 : index
    %c0_42 = arith.constant 0 : index
    %132 = vector.load %arg6[%c0_41, %c0_42] : memref<128x128xbf16, #tpu.memory_space<vmem>>, vector<128x128xbf16>
    %cst_43 = arith.constant dense<0.000000e+00> : vector<8x128xf32>
    %133 = tpu.matmul %131, %132, %cst_43 {dimension_numbers = #tpu.dot_dimension_numbers<[1], [0], [0], [1], [0, 0, 1, 1], [], []>} : vector<8x128xbf16>, vector<128x128xbf16>, vector<8x128xf32> -> vector<8x128xf32>
    %134 = vector.broadcast %130 : vector<1x128xf32> to vector<8x128xf32>
    %135 = arith.addf %133, %134 : vector<8x128xf32>
    %c0_44 = arith.constant 0 : index
    %c0_45 = arith.constant 0 : index
    %136 = vector.load %arg8[%c0_44, %c0_45] : memref<8x128xf32, #tpu.memory_space<vmem>>, vector<8x128xf32>
    tpu.vector_store %arg8[%c0_44, %c0_45], %135 {strides = array<i32>} : memref<8x128xf32, #tpu.memory_space<vmem>>, vector<8x128xf32>,
    return
  }
  func.func @transform_0(%arg0: i32) -> (i32, i32) {
    %c0_i32 = arith.constant 0 : i32
    %c0_i32_0 = arith.constant 0 : i32
    return %arg0, %c0_i32 : i32, i32
  }
  func.func @transform_1(%arg0: i32) -> (i32, i32) {
    %c0_i32 = arith.constant 0 : i32
    %c0_i32_0 = arith.constant 0 : i32
    %c0_i32_1 = arith.constant 0 : i32
    return %c0_i32, %c0_i32_0 : i32, i32
  }
  func.func @transform_2(%arg0: i32) -> (i32, i32) {
    %c0_i32 = arith.constant 0 : i32
    %c0_i32_0 = arith.constant 0 : i32
    %c0_i32_1 = arith.constant 0 : i32
    return %c0_i32, %c0_i32_0 : i32, i32
  }
  func.func @transform_3(%arg0: i32) -> (i32, i32) {
    %c0_i32 = arith.constant 0 : i32
    %c0_i32_0 = arith.constant 0 : i32
    %c0_i32_1 = arith.constant 0 : i32
    return %c0_i32, %c0_i32_0 : i32, i32
  }
  func.func @transform_4(%arg0: i32) -> (i32, i32) {
    %c0_i32 = arith.constant 0 : i32
    %c0_i32_0 = arith.constant 0 : i32
    %c0_i32_1 = arith.constant 0 : i32
    return %c0_i32, %c0_i32_0 : i32, i32
  }
  func.func @transform_5(%arg0: i32) -> (i32, i32) {
    %c0_i32 = arith.constant 0 : i32
    %c0_i32_0 = arith.constant 0 : i32
    %c0_i32_1 = arith.constant 0 : i32
    return %c0_i32, %c0_i32_0 : i32, i32
  }
  func.func @transform_6(%arg0: i32) -> (i32, i32) {
    %c0_i32 = arith.constant 0 : i32
    %c0_i32_0 = arith.constant 0 : i32
    %c0_i32_1 = arith.constant 0 : i32
    return %c0_i32, %c0_i32_0 : i32, i32
  }
  func.func @transform_7(%arg0: i32) -> (i32, i32) {
    %c0_i32 = arith.constant 0 : i32
    %c0_i32_0 = arith.constant 0 : i32
    return %arg0, %c0_i32 : i32, i32
  }
}

module attributes {stable_mosaic.version = 11 : i64} {
  func.func @mlp_encoder_kernel(%arg0: i32, %arg1: memref<8x128xf32, #tpu.memory_space<vmem>>, %arg2: memref<128x128xbf16, #tpu.memory_space<vmem>>, %arg3: memref<128x128xbf16, #tpu.memory_space<vmem>>, %arg4: memref<128x128xbf16, #tpu.memory_space<vmem>>, %arg5: memref<128x128xbf16, #tpu.memory_space<vmem>>, %arg6: memref<128x128xbf16, #tpu.memory_space<vmem>>, %arg7: memref<16x128xf32, #tpu.memory_space<vmem>>, %arg8: memref<8x128xf32, #tpu.memory_space<vmem>>) attributes {dimension_semantics = [#tpu.dimension_semantics<parallel>], iteration_bounds = array<i64: 1>, scalar_prefetch = 0 : i64, scratch_operands = 0 : i64, tpu.core_type = #tpu.core_type<tc>, window_params = [{transform_indices = @transform_0, window_bounds = array<i64: 8, 128>}, {pipeline_mode = #tpu.pipeline_mode<synchronous>, transform_indices = @transform_1, window_bounds = array<i64: 128, 128>}, {pipeline_mode = #tpu.pipeline_mode<synchronous>, transform_indices = @transform_2, window_bounds = array<i64: 128, 128>}, {pipeline_mode = #tpu.pipeline_mode<synchronous>, transform_indices = @transform_3, window_bounds = array<i64: 128, 128>}, {pipeline_mode = #tpu.pipeline_mode<synchronous>, transform_indices = @transform_4, window_bounds = array<i64: 128, 128>}, {pipeline_mode = #tpu.pipeline_mode<synchronous>, transform_indices = @transform_5, window_bounds = array<i64: 128, 128>}, {pipeline_mode = #tpu.pipeline_mode<synchronous>, transform_indices = @transform_6, window_bounds = array<i64: 16, 128>}, {transform_indices = @transform_7, window_bounds = array<i64: 8, 128>}]} {
    %c0 = arith.constant 0 : index
    %c0_0 = arith.constant 0 : index
    %0 = vector.load %arg7[%c0, %c0_0] : memref<16x128xf32, #tpu.memory_space<vmem>>, vector<16x128xf32>
    %1 = vector.extract_strided_slice %0 {offsets = [0, 0], sizes = [1, 128], strides = [1, 1]} : vector<16x128xf32> to vector<1x128xf32>
    %c0_1 = arith.constant 0 : index
    %c0_2 = arith.constant 0 : index
    %2 = vector.load %arg1[%c0_1, %c0_2] : memref<8x128xf32, #tpu.memory_space<vmem>>, vector<8x128xf32>
    %3 = arith.truncf %2 : vector<8x128xf32> to vector<8x128xbf16>
    %c0_3 = arith.constant 0 : index
    %c0_4 = arith.constant 0 : index
    %4 = vector.load %arg2[%c0_3, %c0_4] : memref<128x128xbf16, #tpu.memory_space<vmem>>, vector<128x128xbf16>
    %cst = arith.constant dense<0.000000e+00> : vector<8x128xf32>
    %5 = tpu.matmul %3, %4, %cst {dimension_numbers = #tpu.dot_dimension_numbers<[1], [0], [0], [1], [0, 0, 1, 1], [], []>} : vector<8x128xbf16>, vector<128x128xbf16>, vector<8x128xf32> -> vector<8x128xf32>
    %6 = vector.broadcast %1 : vector<1x128xf32> to vector<8x128xf32>
    %7 = arith.addf %5, %6 : vector<8x128xf32>
    %cst_5 = arith.constant 5.000000e-01 : f32
    %8 = vector.broadcast %cst_5 : f32 to vector<8x128xf32>
    %9 = arith.mulf %8, %7 : vector<8x128xf32>
    %cst_6 = arith.constant 0.707106769 : f32
    %10 = vector.broadcast %cst_6 : f32 to vector<8x128xf32>
    %11 = arith.mulf %7, %10 : vector<8x128xf32>
    %12 = math.erf %11 : vector<8x128xf32>
    %cst_7 = arith.constant 1.000000e+00 : f32
    %13 = vector.broadcast %cst_7 : f32 to vector<8x128xf32>
    %14 = arith.addf %13, %12 : vector<8x128xf32>
    %15 = arith.mulf %9, %14 : vector<8x128xf32>
    %16 = vector.extract_strided_slice %0 {offsets = [1, 0], sizes = [1, 128], strides = [1, 1]} : vector<16x128xf32> to vector<1x128xf32>
    %17 = vector.extract_strided_slice %0 {offsets = [2, 0], sizes = [1, 128], strides = [1, 1]} : vector<16x128xf32> to vector<1x128xf32>
    %18 = vector.extract_strided_slice %0 {offsets = [3, 0], sizes = [1, 128], strides = [1, 1]} : vector<16x128xf32> to vector<1x128xf32>
    %cst_8 = arith.constant dense<0.000000e+00> : vector<8xf32>
    %19 = vector.multi_reduction <add>, %15, %cst_8 [1] : vector<8x128xf32> to vector<8xf32>
    %20 = vector.shape_cast %19 : vector<8xf32> to vector<8x1xf32>
    %cst_9 = arith.constant 3.125000e-02 : f32
    %21 = vector.broadcast %cst_9 : f32 to vector<8x1xf32>
    %22 = arith.mulf %20, %21 : vector<8x1xf32>
    %23 = arith.mulf %15, %15 : vector<8x128xf32>
    %cst_10 = arith.constant dense<0.000000e+00> : vector<8xf32>
    %24 = vector.multi_reduction <add>, %23, %cst_10 [1] : vector<8x128xf32> to vector<8xf32>
    %25 = vector.shape_cast %24 : vector<8xf32> to vector<8x1xf32>
    %cst_11 = arith.constant 3.125000e-02 : f32
    %26 = vector.broadcast %cst_11 : f32 to vector<8x1xf32>
    %27 = arith.mulf %25, %26 : vector<8x1xf32>
    %28 = arith.mulf %22, %22 : vector<8x1xf32>
    %29 = arith.subf %27, %28 : vector<8x1xf32>
    %30 = vector.broadcast %22 : vector<8x1xf32> to vector<8x128xf32>
    %31 = arith.subf %15, %30 : vector<8x128xf32>
    %cst_12 = arith.constant 9.99999974E-6 : f32
    %32 = vector.broadcast %cst_12 : f32 to vector<8x1xf32>
    %33 = arith.addf %29, %32 : vector<8x1xf32>
    %34 = math.rsqrt %33 : vector<8x1xf32>
    %35 = vector.broadcast %34 : vector<8x1xf32> to vector<8x128xf32>
    %36 = arith.mulf %31, %35 : vector<8x128xf32>
    %37 = vector.broadcast %16 : vector<1x128xf32> to vector<8x128xf32>
    %38 = arith.mulf %36, %37 : vector<8x128xf32>
    %39 = vector.broadcast %17 : vector<1x128xf32> to vector<8x128xf32>
    %40 = arith.addf %38, %39 : vector<8x128xf32>
    %41 = arith.truncf %40 : vector<8x128xf32> to vector<8x128xbf16>
    %c0_13 = arith.constant 0 : index
    %c0_14 = arith.constant 0 : index
    %42 = vector.load %arg3[%c0_13, %c0_14] : memref<128x128xbf16, #tpu.memory_space<vmem>>, vector<128x128xbf16>
    %cst_15 = arith.constant dense<0.000000e+00> : vector<8x128xf32>
    %43 = tpu.matmul %41, %42, %cst_15 {dimension_numbers = #tpu.dot_dimension_numbers<[1], [0], [0], [1], [0, 0, 1, 1], [], []>} : vector<8x128xbf16>, vector<128x128xbf16>, vector<8x128xf32> -> vector<8x128xf32>
    %44 = vector.broadcast %18 : vector<1x128xf32> to vector<8x128xf32>
    %45 = arith.addf %43, %44 : vector<8x128xf32>
    %cst_16 = arith.constant 5.000000e-01 : f32
    %46 = vector.broadcast %cst_16 : f32 to vector<8x128xf32>
    %47 = arith.mulf %46, %45 : vector<8x128xf32>
    %cst_17 = arith.constant 0.707106769 : f32
    %48 = vector.broadcast %cst_17 : f32 to vector<8x128xf32>
    %49 = arith.mulf %45, %48 : vector<8x128xf32>
    %50 = math.erf %49 : vector<8x128xf32>
    %cst_18 = arith.constant 1.000000e+00 : f32
    %51 = vector.broadcast %cst_18 : f32 to vector<8x128xf32>
    %52 = arith.addf %51, %50 : vector<8x128xf32>
    %53 = arith.mulf %47, %52 : vector<8x128xf32>
    %54 = vector.extract_strided_slice %0 {offsets = [4, 0], sizes = [1, 128], strides = [1, 1]} : vector<16x128xf32> to vector<1x128xf32>
    %55 = vector.extract_strided_slice %0 {offsets = [5, 0], sizes = [1, 128], strides = [1, 1]} : vector<16x128xf32> to vector<1x128xf32>
    %56 = vector.extract_strided_slice %0 {offsets = [6, 0], sizes = [1, 128], strides = [1, 1]} : vector<16x128xf32> to vector<1x128xf32>
    %cst_19 = arith.constant dense<0.000000e+00> : vector<8xf32>
    %57 = vector.multi_reduction <add>, %53, %cst_19 [1] : vector<8x128xf32> to vector<8xf32>
    %58 = vector.shape_cast %57 : vector<8xf32> to vector<8x1xf32>
    %cst_20 = arith.constant 3.125000e-02 : f32
    %59 = vector.broadcast %cst_20 : f32 to vector<8x1xf32>
    %60 = arith.mulf %58, %59 : vector<8x1xf32>
    %61 = arith.mulf %53, %53 : vector<8x128xf32>
    %cst_21 = arith.constant dense<0.000000e+00> : vector<8xf32>
    %62 = vector.multi_reduction <add>, %61, %cst_21 [1] : vector<8x128xf32> to vector<8xf32>
    %63 = vector.shape_cast %62 : vector<8xf32> to vector<8x1xf32>
    %cst_22 = arith.constant 3.125000e-02 : f32
    %64 = vector.broadcast %cst_22 : f32 to vector<8x1xf32>
    %65 = arith.mulf %63, %64 : vector<8x1xf32>
    %66 = arith.mulf %60, %60 : vector<8x1xf32>
    %67 = arith.subf %65, %66 : vector<8x1xf32>
    %68 = vector.broadcast %60 : vector<8x1xf32> to vector<8x128xf32>
    %69 = arith.subf %53, %68 : vector<8x128xf32>
    %cst_23 = arith.constant 9.99999974E-6 : f32
    %70 = vector.broadcast %cst_23 : f32 to vector<8x1xf32>
    %71 = arith.addf %67, %70 : vector<8x1xf32>
    %72 = math.rsqrt %71 : vector<8x1xf32>
    %73 = vector.broadcast %72 : vector<8x1xf32> to vector<8x128xf32>
    %74 = arith.mulf %69, %73 : vector<8x128xf32>
    %75 = vector.broadcast %54 : vector<1x128xf32> to vector<8x128xf32>
    %76 = arith.mulf %74, %75 : vector<8x128xf32>
    %77 = vector.broadcast %55 : vector<1x128xf32> to vector<8x128xf32>
    %78 = arith.addf %76, %77 : vector<8x128xf32>
    %79 = arith.truncf %78 : vector<8x128xf32> to vector<8x128xbf16>
    %c0_24 = arith.constant 0 : index
    %c0_25 = arith.constant 0 : index
    %80 = vector.load %arg4[%c0_24, %c0_25] : memref<128x128xbf16, #tpu.memory_space<vmem>>, vector<128x128xbf16>
    %cst_26 = arith.constant dense<0.000000e+00> : vector<8x128xf32>
    %81 = tpu.matmul %79, %80, %cst_26 {dimension_numbers = #tpu.dot_dimension_numbers<[1], [0], [0], [1], [0, 0, 1, 1], [], []>} : vector<8x128xbf16>, vector<128x128xbf16>, vector<8x128xf32> -> vector<8x128xf32>
    %82 = vector.broadcast %56 : vector<1x128xf32> to vector<8x128xf32>
    %83 = arith.addf %81, %82 : vector<8x128xf32>
    %cst_27 = arith.constant 5.000000e-01 : f32
    %84 = vector.broadcast %cst_27 : f32 to vector<8x128xf32>
    %85 = arith.mulf %84, %83 : vector<8x128xf32>
    %cst_28 = arith.constant 0.707106769 : f32
    %86 = vector.broadcast %cst_28 : f32 to vector<8x128xf32>
    %87 = arith.mulf %83, %86 : vector<8x128xf32>
    %88 = math.erf %87 : vector<8x128xf32>
    %cst_29 = arith.constant 1.000000e+00 : f32
    %89 = vector.broadcast %cst_29 : f32 to vector<8x128xf32>
    %90 = arith.addf %89, %88 : vector<8x128xf32>
    %91 = arith.mulf %85, %90 : vector<8x128xf32>
    %92 = vector.extract_strided_slice %0 {offsets = [7, 0], sizes = [1, 128], strides = [1, 1]} : vector<16x128xf32> to vector<1x128xf32>
    %93 = vector.extract_strided_slice %0 {offsets = [8, 0], sizes = [1, 128], strides = [1, 1]} : vector<16x128xf32> to vector<1x128xf32>
    %94 = vector.extract_strided_slice %0 {offsets = [9, 0], sizes = [1, 128], strides = [1, 1]} : vector<16x128xf32> to vector<1x128xf32>
    %cst_30 = arith.constant dense<0.000000e+00> : vector<8xf32>
    %95 = vector.multi_reduction <add>, %91, %cst_30 [1] : vector<8x128xf32> to vector<8xf32>
    %96 = vector.shape_cast %95 : vector<8xf32> to vector<8x1xf32>
    %cst_31 = arith.constant 3.125000e-02 : f32
    %97 = vector.broadcast %cst_31 : f32 to vector<8x1xf32>
    %98 = arith.mulf %96, %97 : vector<8x1xf32>
    %99 = arith.mulf %91, %91 : vector<8x128xf32>
    %cst_32 = arith.constant dense<0.000000e+00> : vector<8xf32>
    %100 = vector.multi_reduction <add>, %99, %cst_32 [1] : vector<8x128xf32> to vector<8xf32>
    %101 = vector.shape_cast %100 : vector<8xf32> to vector<8x1xf32>
    %cst_33 = arith.constant 3.125000e-02 : f32
    %102 = vector.broadcast %cst_33 : f32 to vector<8x1xf32>
    %103 = arith.mulf %101, %102 : vector<8x1xf32>
    %104 = arith.mulf %98, %98 : vector<8x1xf32>
    %105 = arith.subf %103, %104 : vector<8x1xf32>
    %106 = vector.broadcast %98 : vector<8x1xf32> to vector<8x128xf32>
    %107 = arith.subf %91, %106 : vector<8x128xf32>
    %cst_34 = arith.constant 9.99999974E-6 : f32
    %108 = vector.broadcast %cst_34 : f32 to vector<8x1xf32>
    %109 = arith.addf %105, %108 : vector<8x1xf32>
    %110 = math.rsqrt %109 : vector<8x1xf32>
    %111 = vector.broadcast %110 : vector<8x1xf32> to vector<8x128xf32>
    %112 = arith.mulf %107, %111 : vector<8x128xf32>
    %113 = vector.broadcast %92 : vector<1x128xf32> to vector<8x128xf32>
    %114 = arith.mulf %112, %113 : vector<8x128xf32>
    %115 = vector.broadcast %93 : vector<1x128xf32> to vector<8x128xf32>
    %116 = arith.addf %114, %115 : vector<8x128xf32>
    %117 = arith.truncf %116 : vector<8x128xf32> to vector<8x128xbf16>
    %c0_35 = arith.constant 0 : index
    %c0_36 = arith.constant 0 : index
    %118 = vector.load %arg5[%c0_35, %c0_36] : memref<128x128xbf16, #tpu.memory_space<vmem>>, vector<128x128xbf16>
    %cst_37 = arith.constant dense<0.000000e+00> : vector<8x128xf32>
    %119 = tpu.matmul %117, %118, %cst_37 {dimension_numbers = #tpu.dot_dimension_numbers<[1], [0], [0], [1], [0, 0, 1, 1], [], []>} : vector<8x128xbf16>, vector<128x128xbf16>, vector<8x128xf32> -> vector<8x128xf32>
    %120 = vector.broadcast %94 : vector<1x128xf32> to vector<8x128xf32>
    %121 = arith.addf %119, %120 : vector<8x128xf32>
    %cst_38 = arith.constant 5.000000e-01 : f32
    %122 = vector.broadcast %cst_38 : f32 to vector<8x128xf32>
    %123 = arith.mulf %122, %121 : vector<8x128xf32>
    %cst_39 = arith.constant 0.707106769 : f32
    %124 = vector.broadcast %cst_39 : f32 to vector<8x128xf32>
    %125 = arith.mulf %121, %124 : vector<8x128xf32>
    %126 = math.erf %125 : vector<8x128xf32>
    %cst_40 = arith.constant 1.000000e+00 : f32
    %127 = vector.broadcast %cst_40 : f32 to vector<8x128xf32>
    %128 = arith.addf %127, %126 : vector<8x128xf32>
    %129 = arith.mulf %123, %128 : vector<8x128xf32>
    %130 = vector.extract_strided_slice %0 {offsets = [10, 0], sizes = [1, 128], strides = [1, 1]} : vector<16x128xf32> to vector<1x128xf32>
    %131 = arith.truncf %129 : vector<8x128xf32> to vector<8x128xbf16>
    %c0_41 = arith.constant 0 : index
    %c0_42 = arith.constant 0 : index
    %132 = vector.load %arg6[%c0_41, %c0_42] : memref<128x128xbf16, #tpu.memory_space<vmem>>, vector<128x128xbf16>
    %cst_43 = arith.constant dense<0.000000e+00> : vector<8x128xf32>
    %133 = tpu.matmul %131, %132, %cst_43 {dimension_numbers = #tpu.dot_dimension_numbers<[1], [0], [0], [1], [0, 0, 1, 1], [], []>} : vector<8x128xbf16>, vector<128x128xbf16>, vector<8x128xf32> -> vector<8x128xf32>
    %134 = vector.broadcast %130 : vector<1x128xf32> to vector<8x128xf32>
    %135 = arith.addf %133, %134 : vector<8x128xf32>
    %c0_44 = arith.constant 0 : index
    %c0_45 = arith.constant 0 : index
    %136 = vector.load %arg8[%c0_44, %c0_45] : memref<8x128xf32, #tpu.memory_space<vmem>>, vector<8x128xf32>
    tpu.vector_store %arg8[%c0_44, %c0_45], %135 {strides = array<i32>} : memref<8x128xf32, #tpu.memory_space<vmem>>, vector<8x128xf32>,
    return
  }
  func.func @transform_0(%arg0: i32) -> (i32, i32) {
    %c0_i32 = arith.constant 0 : i32
    %c0_i32_0 = arith.constant 0 : i32
    return %arg0, %c0_i32 : i32, i32
  }
  func.func @transform_1(%arg0: i32) -> (i32, i32) {
    %c0_i32 = arith.constant 0 : i32
    %c0_i32_0 = arith.constant 0 : i32
    %c0_i32_1 = arith.constant 0 : i32
    return %c0_i32, %c0_i32_0 : i32, i32
  }
  func.func @transform_2(%arg0: i32) -> (i32, i32) {
    %c0_i32 = arith.constant 0 : i32
    %c0_i32_0 = arith.constant 0 : i32
    %c0_i32_1 = arith.constant 0 : i32
    return %c0_i32, %c0_i32_0 : i32, i32
  }
  func.func @transform_3(%arg0: i32) -> (i32, i32) {
    %c0_i32 = arith.constant 0 : i32
    %c0_i32_0 = arith.constant 0 : i32
    %c0_i32_1 = arith.constant 0 : i32
    return %c0_i32, %c0_i32_0 : i32, i32
  }
  func.func @transform_4(%arg0: i32) -> (i32, i32) {
    %c0_i32 = arith.constant 0 : i32
    %c0_i32_0 = arith.constant 0 : i32
    %c0_i32_1 = arith.constant 0 : i32
    return %c0_i32, %c0_i32_0 : i32, i32
  }
  func.func @transform_5(%arg0: i32) -> (i32, i32) {
    %c0_i32 = arith.constant 0 : i32
    %c0_i32_0 = arith.constant 0 : i32
    %c0_i32_1 = arith.constant 0 : i32
    return %c0_i32, %c0_i32_0 : i32, i32
  }
  func.func @transform_6(%arg0: i32) -> (i32, i32) {
    %c0_i32 = arith.constant 0 : i32
    %c0_i32_0 = arith.constant 0 : i32
    %c0_i32_1 = arith.constant 0 : i32
    return %c0_i32, %c0_i32_0 : i32, i32
  }
  func.func @transform_7(%arg0: i32) -> (i32, i32) {
    %c0_i32 = arith.constant 0 : i32
    %c0_i32_0 = arith.constant 0 : i32
    return %arg0, %c0_i32 : i32, i32
  }
}

</mosaic_0001>

<llo_original>
// kernel: _forward_impl.1
$region0: #{_forward_impl.1}
  #allocation0 [shape = 'u32[]', space=smem, size = 0x4, offset = 0x4, fixed_abs, tag = 'smem constant byte address 0x4 - core index']
  #allocation1 [shape = 'u32[144,128]{1,0:T(1,128)}', space=vmem, size = 0x12000, scoped, tag = 'internal scratch']
  %s0 = inlined_call_operand.vmem [shape: f32[8,128], index: 0, kind: input, shape index: {}]
  %s1 = inlined_call_operand.vmem [shape: bf16[128,128], index: 1, kind: input, shape index: {}]
  %s2 = inlined_call_operand.vmem [shape: bf16[128,128], index: 2, kind: input, shape index: {}]
  %s3 = inlined_call_operand.vmem [shape: bf16[128,128], index: 3, kind: input, shape index: {}]
  %s4 = inlined_call_operand.vmem [shape: bf16[128,128], index: 4, kind: input, shape index: {}]
  %s5 = inlined_call_operand.vmem [shape: bf16[128,128], index: 5, kind: input, shape index: {}]
  %s6 = inlined_call_operand.vmem [shape: f32[16,128], index: 6, kind: input, shape index: {}]
  %s7 = inlined_call_operand.hbm [shape: f32[8,128], index: 7, kind: output, shape index: {}]
  %s8 = sld [smem:[#allocation0]]
  $region38: #{_forward_impl.1} parent=0
    _
  %s10 = ssub.s32 1, %s8
  %s11 = scalar_select 0, %s10, %s8
  $region1: #{_forward_impl.1} parent=0
    #allocation2 [shape = 'u8[4096]{0}', space=vmem, size = 0x1000, scoped, tag = 'output window, operand 0, single buffered']
    #allocation3 [shape = 's32[1]{0}', space=sflag, size = 0x4, scoped, tag = 'scoped memory for _forward_impl.1']
    %12 = vsyncpa [#allocation3], 0
    // Predicated region
    $region2: #{_forward_impl.1} parent=1 // pred_check
      _
    $region3: #{_forward_impl.1} parent=1 // pred_check_branch
      %14 = sbr.rel (0) target = $region5
    $region4: #{_forward_impl.1} parent=1 // pred_region
      _
    $region5: #{_forward_impl.1} parent=1 // pred_fallthru
      _
    // Predicated region
    $region6: #{_forward_impl.1} parent=1 // pred_check
      _
    $region7: #{_forward_impl.1} parent=1 // pred_check_branch
      %16 = sbr.rel (0) target = $region9
    $region8: #{_forward_impl.1} parent=1 // pred_region
      _
    $region9: #{_forward_impl.1} parent=1 // pred_fallthru
      _
    // Predicated region
    $region10: #{_forward_impl.1} parent=1 // pred_check
      _
    $region11: #{_forward_impl.1} parent=1 // pred_check_branch
      %18 = sbr.rel (0) target = $region13
    $region12: #{_forward_impl.1} parent=1 // pred_region
      _
    $region13: #{_forward_impl.1} parent=1 // pred_fallthru
      _
    // Predicated region
    $region14: #{_forward_impl.1} parent=1 // pred_check
      _
    $region15: #{_forward_impl.1} parent=1 // pred_check_branch
      %20 = sbr.rel (0) target = $region17
    $region16: #{_forward_impl.1} parent=1 // pred_region
      _
    $region17: #{_forward_impl.1} parent=1 // pred_fallthru
      _
    // Predicated region
    $region18: #{_forward_impl.1} parent=1 // pred_check
      _
    $region19: #{_forward_impl.1} parent=1 // pred_check_branch
      %22 = sbr.rel (0) target = $region21
    $region20: #{_forward_impl.1} parent=1 // pred_region
      _
    $region21: #{_forward_impl.1} parent=1 // pred_fallthru
      _
    // Predicated region
    $region22: #{_forward_impl.1} parent=1 // pred_check
      _
    $region23: #{_forward_impl.1} parent=1 // pred_check_branch
      %24 = sbr.rel (0) target = $region25
    $region24: #{_forward_impl.1} parent=1 // pred_region
      _
    $region25: #{_forward_impl.1} parent=1 // pred_fallthru
      _
    // Predicated region
    $region26: #{_forward_impl.1} parent=1 // pred_check
      _
    $region27: #{_forward_impl.1} parent=1 // pred_check_branch
      %26 = sbr.rel (0) target = $region29
    $region28: #{_forward_impl.1} parent=1 // pred_region
      _
    $region29: #{_forward_impl.1} parent=1 // pred_fallthru
      _
    %v28 = vld [vmem:[%s6] sm:$0xff]
    %v29 = vld [vmem:[%s6 + $0x8] sm:$0xff]
    %v30 = vld [vmem:[%s0] sm:$0xff]
    %v31 = vpack.c.bf16 %v30, %v30
    %v32 = vld [vmem:[%s1] sm:$0xf]
    %v33 = vld [vmem:[%s1 + $0x4] sm:$0xf]
    %v34 = vld [vmem:[%s1 + $0x8] sm:$0xf]
    %v35 = vld [vmem:[%s1 + $0xc] sm:$0xf]
    %v36 = vld [vmem:[%s1 + $0x10] sm:$0xf]
    %v37 = vld [vmem:[%s1 + $0x14] sm:$0xf]
    %v38 = vld [vmem:[%s1 + $0x18] sm:$0xf]
    %v39 = vld [vmem:[%s1 + $0x1c] sm:$0xf]
    %v40 = vld [vmem:[%s1 + $0x20] sm:$0xf]
    %v41 = vld [vmem:[%s1 + $0x24] sm:$0xf]
    %v42 = vld [vmem:[%s1 + $0x28] sm:$0xf]
    %v43 = vld [vmem:[%s1 + $0x2c] sm:$0xf]
    %v44 = vld [vmem:[%s1 + $0x30] sm:$0xf]
    %v45 = vld [vmem:[%s1 + $0x34] sm:$0xf]
    %v46 = vld [vmem:[%s1 + $0x38] sm:$0xf]
    %v47 = vld [vmem:[%s1 + $0x3c] sm:$0xf]
    %v48 = vlaneseq
    %v49 = vshrl.u32 %v48, 7
    %v50 = vsub.s32 0, %v49
    %v51 = vrot.slane %v28, %v50
    %v68 = vunpack.c.l.b16 %v32
    %v69 = vunpack.c.l.b16 %v33
    %v70 = vunpack.c.l.b16 %v34
    %v71 = vunpack.c.l.b16 %v35
    %v72 = vunpack.c.l.b16 %v36
    %v73 = vunpack.c.l.b16 %v37
    %v74 = vunpack.c.l.b16 %v38
    %v75 = vunpack.c.l.b16 %v39
    %v76 = vunpack.c.l.b16 %v40
    %v77 = vunpack.c.l.b16 %v41
    %v78 = vunpack.c.l.b16 %v42
    %v79 = vunpack.c.l.b16 %v43
    %v80 = vunpack.c.l.b16 %v44
    %v81 = vunpack.c.l.b16 %v45
    %v82 = vunpack.c.l.b16 %v46
    %v83 = vunpack.c.l.b16 %v47
    %v84 = vpack.c.b16 %v69, %v68
    %v85 = vpack.c.b16 %v71, %v70
    %v86 = vpack.c.b16 %v73, %v72
    %v87 = vpack.c.b16 %v75, %v74
    %v88 = vpack.c.b16 %v77, %v76
    %v89 = vpack.c.b16 %v79, %v78
    %v90 = vpack.c.b16 %v81, %v80
    %v91 = vpack.c.b16 %v83, %v82
    %100 = vmatprep.subr.bf16.mxu0 0
    %101 = vmatpush1.bf16.msra.mxu0 %v84
    %102 = vmatprep.subr.bf16.mxu0 0
    %103 = vmatpush1.bf16.msra.mxu0 %v85
    %104 = vmatprep.subr.bf16.mxu0 0
    %105 = vmatpush1.bf16.msra.mxu0 %v86
    %106 = vmatprep.subr.bf16.mxu0 0
    %107 = vmatpush1.bf16.msra.mxu0 %v87
    %108 = vmatprep.subr.bf16.mxu0 0
    %109 = vmatpush1.bf16.msra.mxu0 %v88
    %110 = vmatprep.subr.bf16.mxu0 0
    %111 = vmatpush1.bf16.msra.mxu0 %v89
    %112 = vmatprep.subr.bf16.mxu0 0
    %113 = vmatpush1.bf16.msra.mxu0 %v90
    %114 = vmatprep.subr.bf16.mxu0 0
    %115 = vmatpush1.bf16.msra.mxu0 %v91
    %116 = vmatprep.subr.bf16.mxu0 0
    %117 = vmatpush1.bf16.msra.mxu0 0
    %118 = vmatprep.subr.bf16.mxu0 0
    %119 = vmatpush1.bf16.msra.mxu0 0
    %120 = vmatprep.subr.bf16.mxu0 0
    %121 = vmatpush1.bf16.msra.mxu0 0
    %122 = vmatprep.subr.bf16.mxu0 0
    %123 = vmatpush1.bf16.msra.mxu0 0
    %124 = vmatprep.subr.bf16.mxu0 0
    %125 = vmatpush1.bf16.msra.mxu0 0
    %126 = vmatprep.subr.bf16.mxu0 0
    %127 = vmatpush1.bf16.msra.mxu0 0
    %128 = vmatprep.subr.bf16.mxu0 0
    %129 = vmatpush1.bf16.msra.mxu0 0
    %130 = vmatprep.subr.bf16.mxu0 0
    %131 = vmatpush1.bf16.msra.mxu0 0
    %132 = vmatprep.mubr.bf16.mxu0 0
    %133 = vmatmul.mubr.bf16.gmra.mrb[0].mxu0 %v31
    %v134 = vpop.f32.mrb[0].mxu0
    %v135 = vadd.f32 %v51, %v134
    %v136 = vpop.f32.mrb[0].mxu0
    %v137 = vpop.f32.mrb[0].mxu0
    %v138 = vpop.f32.mrb[0].mxu0
    %139 = vdwg.mxu0
    %v140 = vmul.f32 %v135, 0.5
    %v141 = vmul.f32 %v135, 0.70710677
    %v142 = verf.f32.pop %v141
    %v143 = vadd.f32 %v142, 1.0
    %v144 = vmul.f32 %v140, %v143
    %145 = vadd.xlane.f32.xlu0 %v144
    %v146 = vpop.xlane.xlu0 %145
    %v147 = vmul.f32 %v146, 0.03125
    %v148 = vmul.f32 %v144, %v144
    %149 = vadd.xlane.f32.xlu0 %v148
    %v150 = vpop.xlane.xlu0 %149
    %v151 = vmul.f32 %v150, 0.03125
    %v152 = vmul.f32 %v147, %v147
    %v153 = vsub.f32 %v151, %v152
    %v154 = vsub.f32 %v144, %v147
    %v155 = vadd.f32 %v153, 1e-05
    %v156 = vrsqrt.pop %v155
    %v157 = vmul.f32 %v154, %v156
    %v158 = vlaneseq
    %v159 = vshrl.u32 %v158, 7
    %v160 = vsub.s32 1, %v159
    %v161 = vrot.slane %v28, %v160
    %v162 = vmul.f32 %v157, %v161
    %v163 = vlaneseq
    %v164 = vshrl.u32 %v163, 7
    %v165 = vsub.s32 2, %v164
    %v166 = vrot.slane %v28, %v165
    %v167 = vadd.f32 %v162, %v166
    %v168 = vpack.c.bf16 %v167, %v167
    %v169 = vld [vmem:[%s2] sm:$0xf]
    %v170 = vld [vmem:[%s2 + $0x4] sm:$0xf]
    %v171 = vld [vmem:[%s2 + $0x8] sm:$0xf]
    %v172 = vld [vmem:[%s2 + $0xc] sm:$0xf]
    %v173 = vld [vmem:[%s2 + $0x10] sm:$0xf]
    %v174 = vld [vmem:[%s2 + $0x14] sm:$0xf]
    %v175 = vld [vmem:[%s2 + $0x18] sm:$0xf]
    %v176 = vld [vmem:[%s2 + $0x1c] sm:$0xf]
    %v177 = vld [vmem:[%s2 + $0x20] sm:$0xf]
    %v178 = vld [vmem:[%s2 + $0x24] sm:$0xf]
    %v179 = vld [vmem:[%s2 + $0x28] sm:$0xf]
    %v180 = vld [vmem:[%s2 + $0x2c] sm:$0xf]
    %v181 = vld [vmem:[%s2 + $0x30] sm:$0xf]
    %v182 = vld [vmem:[%s2 + $0x34] sm:$0xf]
    %v183 = vld [vmem:[%s2 + $0x38] sm:$0xf]
    %v184 = vld [vmem:[%s2 + $0x3c] sm:$0xf]
    %v185 = vlaneseq
    %v186 = vshrl.u32 %v185, 7
    %v187 = vsub.s32 3, %v186
    %v188 = vrot.slane %v28, %v187
    %v205 = vunpack.c.l.b16 %v169
    %v206 = vunpack.c.l.b16 %v170
    %v207 = vunpack.c.l.b16 %v171
    %v208 = vunpack.c.l.b16 %v172
    %v209 = vunpack.c.l.b16 %v173
    %v210 = vunpack.c.l.b16 %v174
    %v211 = vunpack.c.l.b16 %v175
    %v212 = vunpack.c.l.b16 %v176
    %v213 = vunpack.c.l.b16 %v177
    %v214 = vunpack.c.l.b16 %v178
    %v215 = vunpack.c.l.b16 %v179
    %v216 = vunpack.c.l.b16 %v180
    %v217 = vunpack.c.l.b16 %v181
    %v218 = vunpack.c.l.b16 %v182
    %v219 = vunpack.c.l.b16 %v183
    %v220 = vunpack.c.l.b16 %v184
    %v221 = vpack.c.b16 %v206, %v205
    %v222 = vpack.c.b16 %v208, %v207
    %v223 = vpack.c.b16 %v210, %v209
    %v224 = vpack.c.b16 %v212, %v211
    %v225 = vpack.c.b16 %v214, %v213
    %v226 = vpack.c.b16 %v216, %v215
    %v227 = vpack.c.b16 %v218, %v217
    %v228 = vpack.c.b16 %v220, %v219
    %237 = vmatprep.subr.bf16.mxu0 0
    %238 = vmatpush1.bf16.msra.mxu0 %v221
    %239 = vmatprep.subr.bf16.mxu0 0
    %240 = vmatpush1.bf16.msra.mxu0 %v222
    %241 = vmatprep.subr.bf16.mxu0 0
    %242 = vmatpush1.bf16.msra.mxu0 %v223
    %243 = vmatprep.subr.bf16.mxu0 0
    %244 = vmatpush1.bf16.msra.mxu0 %v224
    %245 = vmatprep.subr.bf16.mxu0 0
    %246 = vmatpush1.bf16.msra.mxu0 %v225
    %247 = vmatprep.subr.bf16.mxu0 0
    %248 = vmatpush1.bf16.msra.mxu0 %v226
    %249 = vmatprep.subr.bf16.mxu0 0
    %250 = vmatpush1.bf16.msra.mxu0 %v227
    %251 = vmatprep.subr.bf16.mxu0 0
    %252 = vmatpush1.bf16.msra.mxu0 %v228
    %253 = vmatprep.subr.bf16.mxu0 0
    %254 = vmatpush1.bf16.msra.mxu0 0
    %255 = vmatprep.subr.bf16.mxu0 0
    %256 = vmatpush1.bf16.msra.mxu0 0
    %257 = vmatprep.subr.bf16.mxu0 0
    %258 = vmatpush1.bf16.msra.mxu0 0
    %259 = vmatprep.subr.bf16.mxu0 0
    %260 = vmatpush1.bf16.msra.mxu0 0
    %261 = vmatprep.subr.bf16.mxu0 0
    %262 = vmatpush1.bf16.msra.mxu0 0
    %263 = vmatprep.subr.bf16.mxu0 0
    %264 = vmatpush1.bf16.msra.mxu0 0
    %265 = vmatprep.subr.bf16.mxu0 0
    %266 = vmatpush1.bf16.msra.mxu0 0
    %267 = vmatprep.subr.bf16.mxu0 0
    %268 = vmatpush1.bf16.msra.mxu0 0
    %269 = vmatprep.mubr.bf16.mxu0 0
    %270 = vmatmul.mubr.bf16.gmra.mrb[0].mxu0 %v168
    %v271 = vpop.f32.mrb[0].mxu0
    %v272 = vadd.f32 %v188, %v271
    %v273 = vpop.f32.mrb[0].mxu0
    %v274 = vpop.f32.mrb[0].mxu0
    %v275 = vpop.f32.mrb[0].mxu0
    %276 = vdwg.mxu0
    %v277 = vmul.f32 %v272, 0.5
    %v278 = vmul.f32 %v272, 0.70710677
    %v279 = verf.f32.pop %v278
    %v280 = vadd.f32 %v279, 1.0
    %v281 = vmul.f32 %v277, %v280
    %282 = vadd.xlane.f32.xlu0 %v281
    %v283 = vpop.xlane.xlu0 %282
    %v284 = vmul.f32 %v283, 0.03125
    %v285 = vmul.f32 %v281, %v281
    %286 = vadd.xlane.f32.xlu0 %v285
    %v287 = vpop.xlane.xlu0 %286
    %v288 = vmul.f32 %v287, 0.03125
    %v289 = vmul.f32 %v284, %v284
    %v290 = vsub.f32 %v288, %v289
    %v291 = vsub.f32 %v281, %v284
    %v292 = vadd.f32 %v290, 1e-05
    %v293 = vrsqrt.pop %v292
    %v294 = vmul.f32 %v291, %v293
    %v295 = vlaneseq
    %v296 = vshrl.u32 %v295, 7
    %v297 = vsub.s32 4, %v296
    %v298 = vrot.slane %v28, %v297
    %v299 = vmul.f32 %v294, %v298
    %v300 = vlaneseq
    %v301 = vshrl.u32 %v300, 7
    %v302 = vsub.s32 5, %v301
    %v303 = vrot.slane %v28, %v302
    %v304 = vadd.f32 %v299, %v303
    %v305 = vpack.c.bf16 %v304, %v304
    %v306 = vld [vmem:[%s3] sm:$0xf]
    %v307 = vld [vmem:[%s3 + $0x4] sm:$0xf]
    %v308 = vld [vmem:[%s3 + $0x8] sm:$0xf]
    %v309 = vld [vmem:[%s3 + $0xc] sm:$0xf]
    %v310 = vld [vmem:[%s3 + $0x10] sm:$0xf]
    %v311 = vld [vmem:[%s3 + $0x14] sm:$0xf]
    %v312 = vld [vmem:[%s3 + $0x18] sm:$0xf]
    %v313 = vld [vmem:[%s3 + $0x1c] sm:$0xf]
    %v314 = vld [vmem:[%s3 + $0x20] sm:$0xf]
    %v315 = vld [vmem:[%s3 + $0x24] sm:$0xf]
    %v316 = vld [vmem:[%s3 + $0x28] sm:$0xf]
    %v317 = vld [vmem:[%s3 + $0x2c] sm:$0xf]
    %v318 = vld [vmem:[%s3 + $0x30] sm:$0xf]
    %v319 = vld [vmem:[%s3 + $0x34] sm:$0xf]
    %v320 = vld [vmem:[%s3 + $0x38] sm:$0xf]
    %v321 = vld [vmem:[%s3 + $0x3c] sm:$0xf]
    %v322 = vlaneseq
    %v323 = vshrl.u32 %v322, 7
    %v324 = vsub.s32 6, %v323
    %v325 = vrot.slane %v28, %v324
    %v342 = vunpack.c.l.b16 %v306
    %v343 = vunpack.c.l.b16 %v307
    %v344 = vunpack.c.l.b16 %v308
    %v345 = vunpack.c.l.b16 %v309
    %v346 = vunpack.c.l.b16 %v310
    %v347 = vunpack.c.l.b16 %v311
    %v348 = vunpack.c.l.b16 %v312
    %v349 = vunpack.c.l.b16 %v313
    %v350 = vunpack.c.l.b16 %v314
    %v351 = vunpack.c.l.b16 %v315
    %v352 = vunpack.c.l.b16 %v316
    %v353 = vunpack.c.l.b16 %v317
    %v354 = vunpack.c.l.b16 %v318
    %v355 = vunpack.c.l.b16 %v319
    %v356 = vunpack.c.l.b16 %v320
    %v357 = vunpack.c.l.b16 %v321
    %v358 = vpack.c.b16 %v343, %v342
    %v359 = vpack.c.b16 %v345, %v344
    %v360 = vpack.c.b16 %v347, %v346
    %v361 = vpack.c.b16 %v349, %v348
    %v362 = vpack.c.b16 %v351, %v350
    %v363 = vpack.c.b16 %v353, %v352
    %v364 = vpack.c.b16 %v355, %v354
    %v365 = vpack.c.b16 %v357, %v356
    %374 = vmatprep.subr.bf16.mxu0 0
    %375 = vmatpush1.bf16.msra.mxu0 %v358
    %376 = vmatprep.subr.bf16.mxu0 0
    %377 = vmatpush1.bf16.msra.mxu0 %v359
    %378 = vmatprep.subr.bf16.mxu0 0
    %379 = vmatpush1.bf16.msra.mxu0 %v360
    %380 = vmatprep.subr.bf16.mxu0 0
    %381 = vmatpush1.bf16.msra.mxu0 %v361
    %382 = vmatprep.subr.bf16.mxu0 0
    %383 = vmatpush1.bf16.msra.mxu0 %v362
    %384 = vmatprep.subr.bf16.mxu0 0
    %385 = vmatpush1.bf16.msra.mxu0 %v363
    %386 = vmatprep.subr.bf16.mxu0 0
    %387 = vmatpush1.bf16.msra.mxu0 %v364
    %388 = vmatprep.subr.bf16.mxu0 0
    %389 = vmatpush1.bf16.msra.mxu0 %v365
    %390 = vmatprep.subr.bf16.mxu0 0
    %391 = vmatpush1.bf16.msra.mxu0 0
    %392 = vmatprep.subr.bf16.mxu0 0
    %393 = vmatpush1.bf16.msra.mxu0 0
    %394 = vmatprep.subr.bf16.mxu0 0
    %395 = vmatpush1.bf16.msra.mxu0 0
    %396 = vmatprep.subr.bf16.mxu0 0
    %397 = vmatpush1.bf16.msra.mxu0 0
    %398 = vmatprep.subr.bf16.mxu0 0
    %399 = vmatpush1.bf16.msra.mxu0 0
    %400 = vmatprep.subr.bf16.mxu0 0
    %401 = vmatpush1.bf16.msra.mxu0 0
    %402 = vmatprep.subr.bf16.mxu0 0
    %403 = vmatpush1.bf16.msra.mxu0 0
    %404 = vmatprep.subr.bf16.mxu0 0
    %405 = vmatpush1.bf16.msra.mxu0 0
    %406 = vmatprep.mubr.bf16.mxu0 0
    %407 = vmatmul.mubr.bf16.gmra.mrb[0].mxu0 %v305
    %v408 = vpop.f32.mrb[0].mxu0
    %v409 = vadd.f32 %v325, %v408
    %v410 = vpop.f32.mrb[0].mxu0
    %v411 = vpop.f32.mrb[0].mxu0
    %v412 = vpop.f32.mrb[0].mxu0
    %413 = vdwg.mxu0
    %v414 = vmul.f32 %v409, 0.5
    %v415 = vmul.f32 %v409, 0.70710677
    %v416 = verf.f32.pop %v415
    %v417 = vadd.f32 %v416, 1.0
    %v418 = vmul.f32 %v414, %v417
    %419 = vadd.xlane.f32.xlu0 %v418
    %v420 = vpop.xlane.xlu0 %419
    %v421 = vmul.f32 %v420, 0.03125
    %v422 = vmul.f32 %v418, %v418
    %423 = vadd.xlane.f32.xlu0 %v422
    %v424 = vpop.xlane.xlu0 %423
    %v425 = vmul.f32 %v424, 0.03125
    %v426 = vmul.f32 %v421, %v421
    %v427 = vsub.f32 %v425, %v426
    %v428 = vsub.f32 %v418, %v421
    %v429 = vadd.f32 %v427, 1e-05
    %v430 = vrsqrt.pop %v429
    %v431 = vmul.f32 %v428, %v430
    %v432 = vlaneseq
    %v433 = vshrl.u32 %v432, 7
    %v434 = vsub.s32 7, %v433
    %v435 = vrot.slane %v28, %v434
    %v436 = vmul.f32 %v431, %v435
    %v437 = vlaneseq
    %v438 = vshrl.u32 %v437, 7
    %v439 = vsub.s32 0, %v438
    %v440 = vrot.slane %v29, %v439
    %v441 = vadd.f32 %v436, %v440
    %v442 = vpack.c.bf16 %v441, %v441
    %v443 = vld [vmem:[%s4] sm:$0xf]
    %v444 = vld [vmem:[%s4 + $0x4] sm:$0xf]
    %v445 = vld [vmem:[%s4 + $0x8] sm:$0xf]
    %v446 = vld [vmem:[%s4 + $0xc] sm:$0xf]
    %v447 = vld [vmem:[%s4 + $0x10] sm:$0xf]
    %v448 = vld [vmem:[%s4 + $0x14] sm:$0xf]
    %v449 = vld [vmem:[%s4 + $0x18] sm:$0xf]
    %v450 = vld [vmem:[%s4 + $0x1c] sm:$0xf]
    %v451 = vld [vmem:[%s4 + $0x20] sm:$0xf]
    %v452 = vld [vmem:[%s4 + $0x24] sm:$0xf]
    %v453 = vld [vmem:[%s4 + $0x28] sm:$0xf]
    %v454 = vld [vmem:[%s4 + $0x2c] sm:$0xf]
    %v455 = vld [vmem:[%s4 + $0x30] sm:$0xf]
    %v456 = vld [vmem:[%s4 + $0x34] sm:$0xf]
    %v457 = vld [vmem:[%s4 + $0x38] sm:$0xf]
    %v458 = vld [vmem:[%s4 + $0x3c] sm:$0xf]
    %v459 = vlaneseq
    %v460 = vshrl.u32 %v459, 7
    %v461 = vsub.s32 1, %v460
    %v462 = vrot.slane %v29, %v461
    %v479 = vunpack.c.l.b16 %v443
    %v480 = vunpack.c.l.b16 %v444
    %v481 = vunpack.c.l.b16 %v445
    %v482 = vunpack.c.l.b16 %v446
    %v483 = vunpack.c.l.b16 %v447
    %v484 = vunpack.c.l.b16 %v448
    %v485 = vunpack.c.l.b16 %v449
    %v486 = vunpack.c.l.b16 %v450
    %v487 = vunpack.c.l.b16 %v451
    %v488 = vunpack.c.l.b16 %v452
    %v489 = vunpack.c.l.b16 %v453
    %v490 = vunpack.c.l.b16 %v454
    %v491 = vunpack.c.l.b16 %v455
    %v492 = vunpack.c.l.b16 %v456
    %v493 = vunpack.c.l.b16 %v457
    %v494 = vunpack.c.l.b16 %v458
    %v495 = vpack.c.b16 %v480, %v479
    %v496 = vpack.c.b16 %v482, %v481
    %v497 = vpack.c.b16 %v484, %v483
    %v498 = vpack.c.b16 %v486, %v485
    %v499 = vpack.c.b16 %v488, %v487
    %v500 = vpack.c.b16 %v490, %v489
    %v501 = vpack.c.b16 %v492, %v491
    %v502 = vpack.c.b16 %v494, %v493
    %511 = vmatprep.subr.bf16.mxu0 0
    %512 = vmatpush1.bf16.msra.mxu0 %v495
    %513 = vmatprep.subr.bf16.mxu0 0
    %514 = vmatpush1.bf16.msra.mxu0 %v496
    %515 = vmatprep.subr.bf16.mxu0 0
    %516 = vmatpush1.bf16.msra.mxu0 %v497
    %517 = vmatprep.subr.bf16.mxu0 0
    %518 = vmatpush1.bf16.msra.mxu0 %v498
    %519 = vmatprep.subr.bf16.mxu0 0
    %520 = vmatpush1.bf16.msra.mxu0 %v499
    %521 = vmatprep.subr.bf16.mxu0 0
    %522 = vmatpush1.bf16.msra.mxu0 %v500
    %523 = vmatprep.subr.bf16.mxu0 0
    %524 = vmatpush1.bf16.msra.mxu0 %v501
    %525 = vmatprep.subr.bf16.mxu0 0
    %526 = vmatpush1.bf16.msra.mxu0 %v502
    %527 = vmatprep.subr.bf16.mxu0 0
    %528 = vmatpush1.bf16.msra.mxu0 0
    %529 = vmatprep.subr.bf16.mxu0 0
    %530 = vmatpush1.bf16.msra.mxu0 0
    %531 = vmatprep.subr.bf16.mxu0 0
    %532 = vmatpush1.bf16.msra.mxu0 0
    %533 = vmatprep.subr.bf16.mxu0 0
    %534 = vmatpush1.bf16.msra.mxu0 0
    %535 = vmatprep.subr.bf16.mxu0 0
    %536 = vmatpush1.bf16.msra.mxu0 0
    %537 = vmatprep.subr.bf16.mxu0 0
    %538 = vmatpush1.bf16.msra.mxu0 0
    %539 = vmatprep.subr.bf16.mxu0 0
    %540 = vmatpush1.bf16.msra.mxu0 0
    %541 = vmatprep.subr.bf16.mxu0 0
    %542 = vmatpush1.bf16.msra.mxu0 0
    %543 = vmatprep.mubr.bf16.mxu0 0
    %544 = vmatmul.mubr.bf16.gmra.mrb[0].mxu0 %v442
    %v545 = vpop.f32.mrb[0].mxu0
    %v546 = vadd.f32 %v462, %v545
    %v547 = vpop.f32.mrb[0].mxu0
    %v548 = vpop.f32.mrb[0].mxu0
    %v549 = vpop.f32.mrb[0].mxu0
    %550 = vdwg.mxu0
    %v551 = vmul.f32 %v546, 0.5
    %v552 = vmul.f32 %v546, 0.70710677
    %v553 = verf.f32.pop %v552
    %v554 = vadd.f32 %v553, 1.0
    %v555 = vmul.f32 %v551, %v554
    %v556 = vpack.c.bf16 %v555, %v555
    %v557 = vld [vmem:[%s5] sm:$0xf]
    %v558 = vld [vmem:[%s5 + $0x4] sm:$0xf]
    %v559 = vld [vmem:[%s5 + $0x8] sm:$0xf]
    %v560 = vld [vmem:[%s5 + $0xc] sm:$0xf]
    %v561 = vld [vmem:[%s5 + $0x10] sm:$0xf]
    %v562 = vld [vmem:[%s5 + $0x14] sm:$0xf]
    %v563 = vld [vmem:[%s5 + $0x18] sm:$0xf]
    %v564 = vld [vmem:[%s5 + $0x1c] sm:$0xf]
    %v565 = vld [vmem:[%s5 + $0x20] sm:$0xf]
    %v566 = vld [vmem:[%s5 + $0x24] sm:$0xf]
    %v567 = vld [vmem:[%s5 + $0x28] sm:$0xf]
    %v568 = vld [vmem:[%s5 + $0x2c] sm:$0xf]
    %v569 = vld [vmem:[%s5 + $0x30] sm:$0xf]
    %v570 = vld [vmem:[%s5 + $0x34] sm:$0xf]
    %v571 = vld [vmem:[%s5 + $0x38] sm:$0xf]
    %v572 = vld [vmem:[%s5 + $0x3c] sm:$0xf]
    %v573 = vlaneseq
    %v574 = vshrl.u32 %v573, 7
    %v575 = vsub.s32 2, %v574
    %v576 = vrot.slane %v29, %v575
    %v593 = vunpack.c.l.b16 %v557
    %v594 = vunpack.c.l.b16 %v558
    %v595 = vunpack.c.l.b16 %v559
    %v596 = vunpack.c.l.b16 %v560
    %v597 = vunpack.c.l.b16 %v561
    %v598 = vunpack.c.l.b16 %v562
    %v599 = vunpack.c.l.b16 %v563
    %v600 = vunpack.c.l.b16 %v564
    %v601 = vunpack.c.l.b16 %v565
    %v602 = vunpack.c.l.b16 %v566
    %v603 = vunpack.c.l.b16 %v567
    %v604 = vunpack.c.l.b16 %v568
    %v605 = vunpack.c.l.b16 %v569
    %v606 = vunpack.c.l.b16 %v570
    %v607 = vunpack.c.l.b16 %v571
    %v608 = vunpack.c.l.b16 %v572
    %v609 = vpack.c.b16 %v594, %v593
    %v610 = vpack.c.b16 %v596, %v595
    %v611 = vpack.c.b16 %v598, %v597
    %v612 = vpack.c.b16 %v600, %v599
    %v613 = vpack.c.b16 %v602, %v601
    %v614 = vpack.c.b16 %v604, %v603
    %v615 = vpack.c.b16 %v606, %v605
    %v616 = vpack.c.b16 %v608, %v607
    %625 = vmatprep.subr.bf16.mxu0 0
    %626 = vmatpush1.bf16.msra.mxu0 %v609
    %627 = vmatprep.subr.bf16.mxu0 0
    %628 = vmatpush1.bf16.msra.mxu0 %v610
    %629 = vmatprep.subr.bf16.mxu0 0
    %630 = vmatpush1.bf16.msra.mxu0 %v611
    %631 = vmatprep.subr.bf16.mxu0 0
    %632 = vmatpush1.bf16.msra.mxu0 %v612
    %633 = vmatprep.subr.bf16.mxu0 0
    %634 = vmatpush1.bf16.msra.mxu0 %v613
    %635 = vmatprep.subr.bf16.mxu0 0
    %636 = vmatpush1.bf16.msra.mxu0 %v614
    %637 = vmatprep.subr.bf16.mxu0 0
    %638 = vmatpush1.bf16.msra.mxu0 %v615
    %639 = vmatprep.subr.bf16.mxu0 0
    %640 = vmatpush1.bf16.msra.mxu0 %v616
    %641 = vmatprep.subr.bf16.mxu0 0
    %642 = vmatpush1.bf16.msra.mxu0 0
    %643 = vmatprep.subr.bf16.mxu0 0
    %644 = vmatpush1.bf16.msra.mxu0 0
    %645 = vmatprep.subr.bf16.mxu0 0
    %646 = vmatpush1.bf16.msra.mxu0 0
    %647 = vmatprep.subr.bf16.mxu0 0
    %648 = vmatpush1.bf16.msra.mxu0 0
    %649 = vmatprep.subr.bf16.mxu0 0
    %650 = vmatpush1.bf16.msra.mxu0 0
    %651 = vmatprep.subr.bf16.mxu0 0
    %652 = vmatpush1.bf16.msra.mxu0 0
    %653 = vmatprep.subr.bf16.mxu0 0
    %654 = vmatpush1.bf16.msra.mxu0 0
    %655 = vmatprep.subr.bf16.mxu0 0
    %656 = vmatpush1.bf16.msra.mxu0 0
    %657 = vmatprep.mubr.bf16.mxu0 0
    %658 = vmatmul.mubr.bf16.gmra.mrb[0].mxu0 %v556
    %v659 = vpop.f32.mrb[0].mxu0
    %v660 = vadd.f32 %v576, %v659
    %v661 = vpop.f32.mrb[0].mxu0
    %v662 = vpop.f32.mrb[0].mxu0
    %v663 = vpop.f32.mrb[0].mxu0
    %664 = vdwg.mxu0
    %665 = vst [vmem:[#allocation2] sm:$0xff] %v660
    // Predicated region
    $region30: #{_forward_impl.1} parent=1 // pred_check
      _
    $region31: #{_forward_impl.1} parent=1 // pred_check_branch
      %667 = sbr.rel (0) target = $region33
    $region32: #{_forward_impl.1} parent=1 // pred_region
      %s669 = ssub.s32 128, 128
      %670 = vsyncadd [#allocation3], %s669
      %s672 = sshll.u32 [#allocation2], 4
      %s673 = int_to_ptr.vmem [resolvable:$true] %s672
      %675 = dma.vmem_to_hbm [thread:$0]  %s673, 128, %s7, [#allocation3]
    $region33: #{_forward_impl.1} parent=1 // pred_fallthru
      _
    // Predicated region
    $region34: #{_forward_impl.1} parent=1 // pred_check
      _
    $region35: #{_forward_impl.1} parent=1 // pred_check_branch
      %677 = sbr.rel (0) target = $region37
    $region36: #{_forward_impl.1} parent=1 // pred_region
      %678 = dma.done [#allocation3], 128
    $region37: #{_forward_impl.1} parent=1 // pred_fallthru
      _
    %679 = vsyncpa [#allocation3], 1

// kernel: _forward_impl.1
$region0: #{_forward_impl.1}
  #allocation0 [shape = 'u32[]', space=smem, size = 0x4, offset = 0x4, fixed_abs, tag = 'smem constant byte address 0x4 - core index']
  #allocation1 [shape = 'u32[144,128]{1,0:T(1,128)}', space=vmem, size = 0x12000, scoped, tag = 'internal scratch']
  %s0 = inlined_call_operand.vmem [shape: f32[8,128], index: 0, kind: input, shape index: {}]
  %s1 = inlined_call_operand.vmem [shape: bf16[128,128], index: 1, kind: input, shape index: {}]
  %s2 = inlined_call_operand.vmem [shape: bf16[128,128], index: 2, kind: input, shape index: {}]
  %s3 = inlined_call_operand.vmem [shape: bf16[128,128], index: 3, kind: input, shape index: {}]
  %s4 = inlined_call_operand.vmem [shape: bf16[128,128], index: 4, kind: input, shape index: {}]
  %s5 = inlined_call_operand.vmem [shape: bf16[128,128], index: 5, kind: input, shape index: {}]
  %s6 = inlined_call_operand.vmem [shape: f32[16,128], index: 6, kind: input, shape index: {}]
  %s7 = inlined_call_operand.hbm [shape: f32[8,128], index: 7, kind: output, shape index: {}]
  %s8 = sld [smem:[#allocation0]]
  $region38: #{_forward_impl.1} parent=0
    _
  %s10 = ssub.s32 1, %s8
  %s11 = scalar_select 0, %s10, %s8
  $region1: #{_forward_impl.1} parent=0
    #allocation2 [shape = 'u8[4096]{0}', space=vmem, size = 0x1000, scoped, tag = 'output window, operand 0, single buffered']
    #allocation3 [shape = 's32[1]{0}', space=sflag, size = 0x4, scoped, tag = 'scoped memory for _forward_impl.1']
    %12 = vsyncpa [#allocation3], 0
    // Predicated region
    $region2: #{_forward_impl.1} parent=1 // pred_check
      _
    $region3: #{_forward_impl.1} parent=1 // pred_check_branch
      %14 = sbr.rel (0) target = $region5
    $region4: #{_forward_impl.1} parent=1 // pred_region
      _
    $region5: #{_forward_impl.1} parent=1 // pred_fallthru
      _
    // Predicated region
    $region6: #{_forward_impl.1} parent=1 // pred_check
      _
    $region7: #{_forward_impl.1} parent=1 // pred_check_branch
      %16 = sbr.rel (0) target = $region9
    $region8: #{_forward_impl.1} parent=1 // pred_region
      _
    $region9: #{_forward_impl.1} parent=1 // pred_fallthru
      _
    // Predicated region
    $region10: #{_forward_impl.1} parent=1 // pred_check
      _
    $region11: #{_forward_impl.1} parent=1 // pred_check_branch
      %18 = sbr.rel (0) target = $region13
    $region12: #{_forward_impl.1} parent=1 // pred_region
      _
    $region13: #{_forward_impl.1} parent=1 // pred_fallthru
      _
    // Predicated region
    $region14: #{_forward_impl.1} parent=1 // pred_check
      _
    $region15: #{_forward_impl.1} parent=1 // pred_check_branch
      %20 = sbr.rel (0) target = $region17
    $region16: #{_forward_impl.1} parent=1 // pred_region
      _
    $region17: #{_forward_impl.1} parent=1 // pred_fallthru
      _
    // Predicated region
    $region18: #{_forward_impl.1} parent=1 // pred_check
      _
    $region19: #{_forward_impl.1} parent=1 // pred_check_branch
      %22 = sbr.rel (0) target = $region21
    $region20: #{_forward_impl.1} parent=1 // pred_region
      _
    $region21: #{_forward_impl.1} parent=1 // pred_fallthru
      _
    // Predicated region
    $region22: #{_forward_impl.1} parent=1 // pred_check
      _
    $region23: #{_forward_impl.1} parent=1 // pred_check_branch
      %24 = sbr.rel (0) target = $region25
    $region24: #{_forward_impl.1} parent=1 // pred_region
      _
    $region25: #{_forward_impl.1} parent=1 // pred_fallthru
      _
    // Predicated region
    $region26: #{_forward_impl.1} parent=1 // pred_check
      _
    $region27: #{_forward_impl.1} parent=1 // pred_check_branch
      %26 = sbr.rel (0) target = $region29
    $region28: #{_forward_impl.1} parent=1 // pred_region
      _
    $region29: #{_forward_impl.1} parent=1 // pred_fallthru
      _
    %v28 = vld [vmem:[%s6] sm:$0xff]
    %v29 = vld [vmem:[%s6 + $0x8] sm:$0xff]
    %v30 = vld [vmem:[%s0] sm:$0xff]
    %v31 = vpack.c.bf16 %v30, %v30
    %v32 = vld [vmem:[%s1] sm:$0xf]
    %v33 = vld [vmem:[%s1 + $0x4] sm:$0xf]
    %v34 = vld [vmem:[%s1 + $0x8] sm:$0xf]
    %v35 = vld [vmem:[%s1 + $0xc] sm:$0xf]
    %v36 = vld [vmem:[%s1 + $0x10] sm:$0xf]
    %v37 = vld [vmem:[%s1 + $0x14] sm:$0xf]
    %v38 = vld [vmem:[%s1 + $0x18] sm:$0xf]
    %v39 = vld [vmem:[%s1 + $0x1c] sm:$0xf]
    %v40 = vld [vmem:[%s1 + $0x20] sm:$0xf]
    %v41 = vld [vmem:[%s1 + $0x24] sm:$0xf]
    %v42 = vld [vmem:[%s1 + $0x28] sm:$0xf]
    %v43 = vld [vmem:[%s1 + $0x2c] sm:$0xf]
    %v44 = vld [vmem:[%s1 + $0x30] sm:$0xf]
    %v45 = vld [vmem:[%s1 + $0x34] sm:$0xf]
    %v46 = vld [vmem:[%s1 + $0x38] sm:$0xf]
    %v47 = vld [vmem:[%s1 + $0x3c] sm:$0xf]
    %v48 = vlaneseq
    %v49 = vshrl.u32 %v48, 7
    %v50 = vsub.s32 0, %v49
    %v51 = vrot.slane %v28, %v50
    %v68 = vunpack.c.l.b16 %v32
    %v69 = vunpack.c.l.b16 %v33
    %v70 = vunpack.c.l.b16 %v34
    %v71 = vunpack.c.l.b16 %v35
    %v72 = vunpack.c.l.b16 %v36
    %v73 = vunpack.c.l.b16 %v37
    %v74 = vunpack.c.l.b16 %v38
    %v75 = vunpack.c.l.b16 %v39
    %v76 = vunpack.c.l.b16 %v40
    %v77 = vunpack.c.l.b16 %v41
    %v78 = vunpack.c.l.b16 %v42
    %v79 = vunpack.c.l.b16 %v43
    %v80 = vunpack.c.l.b16 %v44
    %v81 = vunpack.c.l.b16 %v45
    %v82 = vunpack.c.l.b16 %v46
    %v83 = vunpack.c.l.b16 %v47
    %v84 = vpack.c.b16 %v69, %v68
    %v85 = vpack.c.b16 %v71, %v70
    %v86 = vpack.c.b16 %v73, %v72
    %v87 = vpack.c.b16 %v75, %v74
    %v88 = vpack.c.b16 %v77, %v76
    %v89 = vpack.c.b16 %v79, %v78
    %v90 = vpack.c.b16 %v81, %v80
    %v91 = vpack.c.b16 %v83, %v82
    %100 = vmatprep.subr.bf16.mxu0 0
    %101 = vmatpush1.bf16.msra.mxu0 %v84
    %102 = vmatprep.subr.bf16.mxu0 0
    %103 = vmatpush1.bf16.msra.mxu0 %v85
    %104 = vmatprep.subr.bf16.mxu0 0
    %105 = vmatpush1.bf16.msra.mxu0 %v86
    %106 = vmatprep.subr.bf16.mxu0 0
    %107 = vmatpush1.bf16.msra.mxu0 %v87
    %108 = vmatprep.subr.bf16.mxu0 0
    %109 = vmatpush1.bf16.msra.mxu0 %v88
    %110 = vmatprep.subr.bf16.mxu0 0
    %111 = vmatpush1.bf16.msra.mxu0 %v89
    %112 = vmatprep.subr.bf16.mxu0 0
    %113 = vmatpush1.bf16.msra.mxu0 %v90
    %114 = vmatprep.subr.bf16.mxu0 0
    %115 = vmatpush1.bf16.msra.mxu0 %v91
    %116 = vmatprep.subr.bf16.mxu0 0
    %117 = vmatpush1.bf16.msra.mxu0 0
    %118 = vmatprep.subr.bf16.mxu0 0
    %119 = vmatpush1.bf16.msra.mxu0 0
    %120 = vmatprep.subr.bf16.mxu0 0
    %121 = vmatpush1.bf16.msra.mxu0 0
    %122 = vmatprep.subr.bf16.mxu0 0
    %123 = vmatpush1.bf16.msra.mxu0 0
    %124 = vmatprep.subr.bf16.mxu0 0
    %125 = vmatpush1.bf16.msra.mxu0 0
    %126 = vmatprep.subr.bf16.mxu0 0
    %127 = vmatpush1.bf16.msra.mxu0 0
    %128 = vmatprep.subr.bf16.mxu0 0
    %129 = vmatpush1.bf16.msra.mxu0 0
    %130 = vmatprep.subr.bf16.mxu0 0
    %131 = vmatpush1.bf16.msra.mxu0 0
    %132 = vmatprep.mubr.bf16.mxu0 0
    %133 = vmatmul.mubr.bf16.gmra.mrb[0].mxu0 %v31
    %v134 = vpop.f32.mrb[0].mxu0
    %v135 = vadd.f32 %v51, %v134
    %v136 = vpop.f32.mrb[0].mxu0
    %v137 = vpop.f32.mrb[0].mxu0
    %v138 = vpop.f32.mrb[0].mxu0
    %139 = vdwg.mxu0
    %v140 = vmul.f32 %v135, 0.5
    %v141 = vmul.f32 %v135, 0.70710677
    %v142 = verf.f32.pop %v141
    %v143 = vadd.f32 %v142, 1.0
    %v144 = vmul.f32 %v140, %v143
    %145 = vadd.xlane.f32.xlu0 %v144
    %v146 = vpop.xlane.xlu0 %145
    %v147 = vmul.f32 %v146, 0.03125
    %v148 = vmul.f32 %v144, %v144
    %149 = vadd.xlane.f32.xlu0 %v148
    %v150 = vpop.xlane.xlu0 %149
    %v151 = vmul.f32 %v150, 0.03125
    %v152 = vmul.f32 %v147, %v147
    %v153 = vsub.f32 %v151, %v152
    %v154 = vsub.f32 %v144, %v147
    %v155 = vadd.f32 %v153, 1e-05
    %v156 = vrsqrt.pop %v155
    %v157 = vmul.f32 %v154, %v156
    %v158 = vlaneseq
    %v159 = vshrl.u32 %v158, 7
    %v160 = vsub.s32 1, %v159
    %v161 = vrot.slane %v28, %v160
    %v162 = vmul.f32 %v157, %v161
    %v163 = vlaneseq
    %v164 = vshrl.u32 %v163, 7
    %v165 = vsub.s32 2, %v164
    %v166 = vrot.slane %v28, %v165
    %v167 = vadd.f32 %v162, %v166
    %v168 = vpack.c.bf16 %v167, %v167
    %v169 = vld [vmem:[%s2] sm:$0xf]
    %v170 = vld [vmem:[%s2 + $0x4] sm:$0xf]
    %v171 = vld [vmem:[%s2 + $0x8] sm:$0xf]
    %v172 = vld [vmem:[%s2 + $0xc] sm:$0xf]
    %v173 = vld [vmem:[%s2 + $0x10] sm:$0xf]
    %v174 = vld [vmem:[%s2 + $0x14] sm:$0xf]
    %v175 = vld [vmem:[%s2 + $0x18] sm:$0xf]
    %v176 = vld [vmem:[%s2 + $0x1c] sm:$0xf]
    %v177 = vld [vmem:[%s2 + $0x20] sm:$0xf]
    %v178 = vld [vmem:[%s2 + $0x24] sm:$0xf]
    %v179 = vld [vmem:[%s2 + $0x28] sm:$0xf]
    %v180 = vld [vmem:[%s2 + $0x2c] sm:$0xf]
    %v181 = vld [vmem:[%s2 + $0x30] sm:$0xf]
    %v182 = vld [vmem:[%s2 + $0x34] sm:$0xf]
    %v183 = vld [vmem:[%s2 + $0x38] sm:$0xf]
    %v184 = vld [vmem:[%s2 + $0x3c] sm:$0xf]
    %v185 = vlaneseq
    %v186 = vshrl.u32 %v185, 7
    %v187 = vsub.s32 3, %v186
    %v188 = vrot.slane %v28, %v187
    %v205 = vunpack.c.l.b16 %v169
    %v206 = vunpack.c.l.b16 %v170
    %v207 = vunpack.c.l.b16 %v171
    %v208 = vunpack.c.l.b16 %v172
    %v209 = vunpack.c.l.b16 %v173
    %v210 = vunpack.c.l.b16 %v174
    %v211 = vunpack.c.l.b16 %v175
    %v212 = vunpack.c.l.b16 %v176
    %v213 = vunpack.c.l.b16 %v177
    %v214 = vunpack.c.l.b16 %v178
    %v215 = vunpack.c.l.b16 %v179
    %v216 = vunpack.c.l.b16 %v180
    %v217 = vunpack.c.l.b16 %v181
    %v218 = vunpack.c.l.b16 %v182
    %v219 = vunpack.c.l.b16 %v183
    %v220 = vunpack.c.l.b16 %v184
    %v221 = vpack.c.b16 %v206, %v205
    %v222 = vpack.c.b16 %v208, %v207
    %v223 = vpack.c.b16 %v210, %v209
    %v224 = vpack.c.b16 %v212, %v211
    %v225 = vpack.c.b16 %v214, %v213
    %v226 = vpack.c.b16 %v216, %v215
    %v227 = vpack.c.b16 %v218, %v217
    %v228 = vpack.c.b16 %v220, %v219
    %237 = vmatprep.subr.bf16.mxu0 0
    %238 = vmatpush1.bf16.msra.mxu0 %v221
    %239 = vmatprep.subr.bf16.mxu0 0
    %240 = vmatpush1.bf16.msra.mxu0 %v222
    %241 = vmatprep.subr.bf16.mxu0 0
    %242 = vmatpush1.bf16.msra.mxu0 %v223
    %243 = vmatprep.subr.bf16.mxu0 0
    %244 = vmatpush1.bf16.msra.mxu0 %v224
    %245 = vmatprep.subr.bf16.mxu0 0
    %246 = vmatpush1.bf16.msra.mxu0 %v225
    %247 = vmatprep.subr.bf16.mxu0 0
    %248 = vmatpush1.bf16.msra.mxu0 %v226
    %249 = vmatprep.subr.bf16.mxu0 0
    %250 = vmatpush1.bf16.msra.mxu0 %v227
    %251 = vmatprep.subr.bf16.mxu0 0
    %252 = vmatpush1.bf16.msra.mxu0 %v228
    %253 = vmatprep.subr.bf16.mxu0 0
    %254 = vmatpush1.bf16.msra.mxu0 0
    %255 = vmatprep.subr.bf16.mxu0 0
    %256 = vmatpush1.bf16.msra.mxu0 0
    %257 = vmatprep.subr.bf16.mxu0 0
    %258 = vmatpush1.bf16.msra.mxu0 0
    %259 = vmatprep.subr.bf16.mxu0 0
    %260 = vmatpush1.bf16.msra.mxu0 0
    %261 = vmatprep.subr.bf16.mxu0 0
    %262 = vmatpush1.bf16.msra.mxu0 0
    %263 = vmatprep.subr.bf16.mxu0 0
    %264 = vmatpush1.bf16.msra.mxu0 0
    %265 = vmatprep.subr.bf16.mxu0 0
    %266 = vmatpush1.bf16.msra.mxu0 0
    %267 = vmatprep.subr.bf16.mxu0 0
    %268 = vmatpush1.bf16.msra.mxu0 0
    %269 = vmatprep.mubr.bf16.mxu0 0
    %270 = vmatmul.mubr.bf16.gmra.mrb[0].mxu0 %v168
    %v271 = vpop.f32.mrb[0].mxu0
    %v272 = vadd.f32 %v188, %v271
    %v273 = vpop.f32.mrb[0].mxu0
    %v274 = vpop.f32.mrb[0].mxu0
    %v275 = vpop.f32.mrb[0].mxu0
    %276 = vdwg.mxu0
    %v277 = vmul.f32 %v272, 0.5
    %v278 = vmul.f32 %v272, 0.70710677
    %v279 = verf.f32.pop %v278
    %v280 = vadd.f32 %v279, 1.0
    %v281 = vmul.f32 %v277, %v280
    %282 = vadd.xlane.f32.xlu0 %v281
    %v283 = vpop.xlane.xlu0 %282
    %v284 = vmul.f32 %v283, 0.03125
    %v285 = vmul.f32 %v281, %v281
    %286 = vadd.xlane.f32.xlu0 %v285
    %v287 = vpop.xlane.xlu0 %286
    %v288 = vmul.f32 %v287, 0.03125
    %v289 = vmul.f32 %v284, %v284
    %v290 = vsub.f32 %v288, %v289
    %v291 = vsub.f32 %v281, %v284
    %v292 = vadd.f32 %v290, 1e-05
    %v293 = vrsqrt.pop %v292
    %v294 = vmul.f32 %v291, %v293
    %v295 = vlaneseq
    %v296 = vshrl.u32 %v295, 7
    %v297 = vsub.s32 4, %v296
    %v298 = vrot.slane %v28, %v297
    %v299 = vmul.f32 %v294, %v298
    %v300 = vlaneseq
    %v301 = vshrl.u32 %v300, 7
    %v302 = vsub.s32 5, %v301
    %v303 = vrot.slane %v28, %v302
    %v304 = vadd.f32 %v299, %v303
    %v305 = vpack.c.bf16 %v304, %v304
    %v306 = vld [vmem:[%s3] sm:$0xf]
    %v307 = vld [vmem:[%s3 + $0x4] sm:$0xf]
    %v308 = vld [vmem:[%s3 + $0x8] sm:$0xf]
    %v309 = vld [vmem:[%s3 + $0xc] sm:$0xf]
    %v310 = vld [vmem:[%s3 + $0x10] sm:$0xf]
    %v311 = vld [vmem:[%s3 + $0x14] sm:$0xf]
    %v312 = vld [vmem:[%s3 + $0x18] sm:$0xf]
    %v313 = vld [vmem:[%s3 + $0x1c] sm:$0xf]
    %v314 = vld [vmem:[%s3 + $0x20] sm:$0xf]
    %v315 = vld [vmem:[%s3 + $0x24] sm:$0xf]
    %v316 = vld [vmem:[%s3 + $0x28] sm:$0xf]
    %v317 = vld [vmem:[%s3 + $0x2c] sm:$0xf]
    %v318 = vld [vmem:[%s3 + $0x30] sm:$0xf]
    %v319 = vld [vmem:[%s3 + $0x34] sm:$0xf]
    %v320 = vld [vmem:[%s3 + $0x38] sm:$0xf]
    %v321 = vld [vmem:[%s3 + $0x3c] sm:$0xf]
    %v322 = vlaneseq
    %v323 = vshrl.u32 %v322, 7
    %v324 = vsub.s32 6, %v323
    %v325 = vrot.slane %v28, %v324
    %v342 = vunpack.c.l.b16 %v306
    %v343 = vunpack.c.l.b16 %v307
    %v344 = vunpack.c.l.b16 %v308
    %v345 = vunpack.c.l.b16 %v309
    %v346 = vunpack.c.l.b16 %v310
    %v347 = vunpack.c.l.b16 %v311
    %v348 = vunpack.c.l.b16 %v312
    %v349 = vunpack.c.l.b16 %v313
    %v350 = vunpack.c.l.b16 %v314
    %v351 = vunpack.c.l.b16 %v315
    %v352 = vunpack.c.l.b16 %v316
    %v353 = vunpack.c.l.b16 %v317
    %v354 = vunpack.c.l.b16 %v318
    %v355 = vunpack.c.l.b16 %v319
    %v356 = vunpack.c.l.b16 %v320
    %v357 = vunpack.c.l.b16 %v321
    %v358 = vpack.c.b16 %v343, %v342
    %v359 = vpack.c.b16 %v345, %v344
    %v360 = vpack.c.b16 %v347, %v346
    %v361 = vpack.c.b16 %v349, %v348
    %v362 = vpack.c.b16 %v351, %v350
    %v363 = vpack.c.b16 %v353, %v352
    %v364 = vpack.c.b16 %v355, %v354
    %v365 = vpack.c.b16 %v357, %v356
    %374 = vmatprep.subr.bf16.mxu0 0
    %375 = vmatpush1.bf16.msra.mxu0 %v358
    %376 = vmatprep.subr.bf16.mxu0 0
    %377 = vmatpush1.bf16.msra.mxu0 %v359
    %378 = vmatprep.subr.bf16.mxu0 0
    %379 = vmatpush1.bf16.msra.mxu0 %v360
    %380 = vmatprep.subr.bf16.mxu0 0
    %381 = vmatpush1.bf16.msra.mxu0 %v361
    %382 = vmatprep.subr.bf16.mxu0 0
    %383 = vmatpush1.bf16.msra.mxu0 %v362
    %384 = vmatprep.subr.bf16.mxu0 0
    %385 = vmatpush1.bf16.msra.mxu0 %v363
    %386 = vmatprep.subr.bf16.mxu0 0
    %387 = vmatpush1.bf16.msra.mxu0 %v364
    %388 = vmatprep.subr.bf16.mxu0 0
    %389 = vmatpush1.bf16.msra.mxu0 %v365
    %390 = vmatprep.subr.bf16.mxu0 0
    %391 = vmatpush1.bf16.msra.mxu0 0
    %392 = vmatprep.subr.bf16.mxu0 0
    %393 = vmatpush1.bf16.msra.mxu0 0
    %394 = vmatprep.subr.bf16.mxu0 0
    %395 = vmatpush1.bf16.msra.mxu0 0
    %396 = vmatprep.subr.bf16.mxu0 0
    %397 = vmatpush1.bf16.msra.mxu0 0
    %398 = vmatprep.subr.bf16.mxu0 0
    %399 = vmatpush1.bf16.msra.mxu0 0
    %400 = vmatprep.subr.bf16.mxu0 0
    %401 = vmatpush1.bf16.msra.mxu0 0
    %402 = vmatprep.subr.bf16.mxu0 0
    %403 = vmatpush1.bf16.msra.mxu0 0
    %404 = vmatprep.subr.bf16.mxu0 0
    %405 = vmatpush1.bf16.msra.mxu0 0
    %406 = vmatprep.mubr.bf16.mxu0 0
    %407 = vmatmul.mubr.bf16.gmra.mrb[0].mxu0 %v305
    %v408 = vpop.f32.mrb[0].mxu0
    %v409 = vadd.f32 %v325, %v408
    %v410 = vpop.f32.mrb[0].mxu0
    %v411 = vpop.f32.mrb[0].mxu0
    %v412 = vpop.f32.mrb[0].mxu0
    %413 = vdwg.mxu0
    %v414 = vmul.f32 %v409, 0.5
    %v415 = vmul.f32 %v409, 0.70710677
    %v416 = verf.f32.pop %v415
    %v417 = vadd.f32 %v416, 1.0
    %v418 = vmul.f32 %v414, %v417
    %419 = vadd.xlane.f32.xlu0 %v418
    %v420 = vpop.xlane.xlu0 %419
    %v421 = vmul.f32 %v420, 0.03125
    %v422 = vmul.f32 %v418, %v418
    %423 = vadd.xlane.f32.xlu0 %v422
    %v424 = vpop.xlane.xlu0 %423
    %v425 = vmul.f32 %v424, 0.03125
    %v426 = vmul.f32 %v421, %v421
    %v427 = vsub.f32 %v425, %v426
    %v428 = vsub.f32 %v418, %v421
    %v429 = vadd.f32 %v427, 1e-05
    %v430 = vrsqrt.pop %v429
    %v431 = vmul.f32 %v428, %v430
    %v432 = vlaneseq
    %v433 = vshrl.u32 %v432, 7
    %v434 = vsub.s32 7, %v433
    %v435 = vrot.slane %v28, %v434
    %v436 = vmul.f32 %v431, %v435
    %v437 = vlaneseq
    %v438 = vshrl.u32 %v437, 7
    %v439 = vsub.s32 0, %v438
    %v440 = vrot.slane %v29, %v439
    %v441 = vadd.f32 %v436, %v440
    %v442 = vpack.c.bf16 %v441, %v441
    %v443 = vld [vmem:[%s4] sm:$0xf]
    %v444 = vld [vmem:[%s4 + $0x4] sm:$0xf]
    %v445 = vld [vmem:[%s4 + $0x8] sm:$0xf]
    %v446 = vld [vmem:[%s4 + $0xc] sm:$0xf]
    %v447 = vld [vmem:[%s4 + $0x10] sm:$0xf]
    %v448 = vld [vmem:[%s4 + $0x14] sm:$0xf]
    %v449 = vld [vmem:[%s4 + $0x18] sm:$0xf]
    %v450 = vld [vmem:[%s4 + $0x1c] sm:$0xf]
    %v451 = vld [vmem:[%s4 + $0x20] sm:$0xf]
    %v452 = vld [vmem:[%s4 + $0x24] sm:$0xf]
    %v453 = vld [vmem:[%s4 + $0x28] sm:$0xf]
    %v454 = vld [vmem:[%s4 + $0x2c] sm:$0xf]
    %v455 = vld [vmem:[%s4 + $0x30] sm:$0xf]
    %v456 = vld [vmem:[%s4 + $0x34] sm:$0xf]
    %v457 = vld [vmem:[%s4 + $0x38] sm:$0xf]
    %v458 = vld [vmem:[%s4 + $0x3c] sm:$0xf]
    %v459 = vlaneseq
    %v460 = vshrl.u32 %v459, 7
    %v461 = vsub.s32 1, %v460
    %v462 = vrot.slane %v29, %v461
    %v479 = vunpack.c.l.b16 %v443
    %v480 = vunpack.c.l.b16 %v444
    %v481 = vunpack.c.l.b16 %v445
    %v482 = vunpack.c.l.b16 %v446
    %v483 = vunpack.c.l.b16 %v447
    %v484 = vunpack.c.l.b16 %v448
    %v485 = vunpack.c.l.b16 %v449
    %v486 = vunpack.c.l.b16 %v450
    %v487 = vunpack.c.l.b16 %v451
    %v488 = vunpack.c.l.b16 %v452
    %v489 = vunpack.c.l.b16 %v453
    %v490 = vunpack.c.l.b16 %v454
    %v491 = vunpack.c.l.b16 %v455
    %v492 = vunpack.c.l.b16 %v456
    %v493 = vunpack.c.l.b16 %v457
    %v494 = vunpack.c.l.b16 %v458
    %v495 = vpack.c.b16 %v480, %v479
    %v496 = vpack.c.b16 %v482, %v481
    %v497 = vpack.c.b16 %v484, %v483
    %v498 = vpack.c.b16 %v486, %v485
    %v499 = vpack.c.b16 %v488, %v487
    %v500 = vpack.c.b16 %v490, %v489
    %v501 = vpack.c.b16 %v492, %v491
    %v502 = vpack.c.b16 %v494, %v493
    %511 = vmatprep.subr.bf16.mxu0 0
    %512 = vmatpush1.bf16.msra.mxu0 %v495
    %513 = vmatprep.subr.bf16.mxu0 0
    %514 = vmatpush1.bf16.msra.mxu0 %v496
    %515 = vmatprep.subr.bf16.mxu0 0
    %516 = vmatpush1.bf16.msra.mxu0 %v497
    %517 = vmatprep.subr.bf16.mxu0 0
    %518 = vmatpush1.bf16.msra.mxu0 %v498
    %519 = vmatprep.subr.bf16.mxu0 0
    %520 = vmatpush1.bf16.msra.mxu0 %v499
    %521 = vmatprep.subr.bf16.mxu0 0
    %522 = vmatpush1.bf16.msra.mxu0 %v500
    %523 = vmatprep.subr.bf16.mxu0 0
    %524 = vmatpush1.bf16.msra.mxu0 %v501
    %525 = vmatprep.subr.bf16.mxu0 0
    %526 = vmatpush1.bf16.msra.mxu0 %v502
    %527 = vmatprep.subr.bf16.mxu0 0
    %528 = vmatpush1.bf16.msra.mxu0 0
    %529 = vmatprep.subr.bf16.mxu0 0
    %530 = vmatpush1.bf16.msra.mxu0 0
    %531 = vmatprep.subr.bf16.mxu0 0
    %532 = vmatpush1.bf16.msra.mxu0 0
    %533 = vmatprep.subr.bf16.mxu0 0
    %534 = vmatpush1.bf16.msra.mxu0 0
    %535 = vmatprep.subr.bf16.mxu0 0
    %536 = vmatpush1.bf16.msra.mxu0 0
    %537 = vmatprep.subr.bf16.mxu0 0
    %538 = vmatpush1.bf16.msra.mxu0 0
    %539 = vmatprep.subr.bf16.mxu0 0
    %540 = vmatpush1.bf16.msra.mxu0 0
    %541 = vmatprep.subr.bf16.mxu0 0
    %542 = vmatpush1.bf16.msra.mxu0 0
    %543 = vmatprep.mubr.bf16.mxu0 0
    %544 = vmatmul.mubr.bf16.gmra.mrb[0].mxu0 %v442
    %v545 = vpop.f32.mrb[0].mxu0
    %v546 = vadd.f32 %v462, %v545
    %v547 = vpop.f32.mrb[0].mxu0
    %v548 = vpop.f32.mrb[0].mxu0
    %v549 = vpop.f32.mrb[0].mxu0
    %550 = vdwg.mxu0
    %v551 = vmul.f32 %v546, 0.5
    %v552 = vmul.f32 %v546, 0.70710677
    %v553 = verf.f32.pop %v552
    %v554 = vadd.f32 %v553, 1.0
    %v555 = vmul.f32 %v551, %v554
    %v556 = vpack.c.bf16 %v555, %v555
    %v557 = vld [vmem:[%s5] sm:$0xf]
    %v558 = vld [vmem:[%s5 + $0x4] sm:$0xf]
    %v559 = vld [vmem:[%s5 + $0x8] sm:$0xf]
    %v560 = vld [vmem:[%s5 + $0xc] sm:$0xf]
    %v561 = vld [vmem:[%s5 + $0x10] sm:$0xf]
    %v562 = vld [vmem:[%s5 + $0x14] sm:$0xf]
    %v563 = vld [vmem:[%s5 + $0x18] sm:$0xf]
    %v564 = vld [vmem:[%s5 + $0x1c] sm:$0xf]
    %v565 = vld [vmem:[%s5 + $0x20] sm:$0xf]
    %v566 = vld [vmem:[%s5 + $0x24] sm:$0xf]
    %v567 = vld [vmem:[%s5 + $0x28] sm:$0xf]
    %v568 = vld [vmem:[%s5 + $0x2c] sm:$0xf]
    %v569 = vld [vmem:[%s5 + $0x30] sm:$0xf]
    %v570 = vld [vmem:[%s5 + $0x34] sm:$0xf]
    %v571 = vld [vmem:[%s5 + $0x38] sm:$0xf]
    %v572 = vld [vmem:[%s5 + $0x3c] sm:$0xf]
    %v573 = vlaneseq
    %v574 = vshrl.u32 %v573, 7
    %v575 = vsub.s32 2, %v574
    %v576 = vrot.slane %v29, %v575
    %v593 = vunpack.c.l.b16 %v557
    %v594 = vunpack.c.l.b16 %v558
    %v595 = vunpack.c.l.b16 %v559
    %v596 = vunpack.c.l.b16 %v560
    %v597 = vunpack.c.l.b16 %v561
    %v598 = vunpack.c.l.b16 %v562
    %v599 = vunpack.c.l.b16 %v563
    %v600 = vunpack.c.l.b16 %v564
    %v601 = vunpack.c.l.b16 %v565
    %v602 = vunpack.c.l.b16 %v566
    %v603 = vunpack.c.l.b16 %v567
    %v604 = vunpack.c.l.b16 %v568
    %v605 = vunpack.c.l.b16 %v569
    %v606 = vunpack.c.l.b16 %v570
    %v607 = vunpack.c.l.b16 %v571
    %v608 = vunpack.c.l.b16 %v572
    %v609 = vpack.c.b16 %v594, %v593
    %v610 = vpack.c.b16 %v596, %v595
    %v611 = vpack.c.b16 %v598, %v597
    %v612 = vpack.c.b16 %v600, %v599
    %v613 = vpack.c.b16 %v602, %v601
    %v614 = vpack.c.b16 %v604, %v603
    %v615 = vpack.c.b16 %v606, %v605
    %v616 = vpack.c.b16 %v608, %v607
    %625 = vmatprep.subr.bf16.mxu0 0
    %626 = vmatpush1.bf16.msra.mxu0 %v609
    %627 = vmatprep.subr.bf16.mxu0 0
    %628 = vmatpush1.bf16.msra.mxu0 %v610
    %629 = vmatprep.subr.bf16.mxu0 0
    %630 = vmatpush1.bf16.msra.mxu0 %v611
    %631 = vmatprep.subr.bf16.mxu0 0
    %632 = vmatpush1.bf16.msra.mxu0 %v612
    %633 = vmatprep.subr.bf16.mxu0 0
    %634 = vmatpush1.bf16.msra.mxu0 %v613
    %635 = vmatprep.subr.bf16.mxu0 0
    %636 = vmatpush1.bf16.msra.mxu0 %v614
    %637 = vmatprep.subr.bf16.mxu0 0
    %638 = vmatpush1.bf16.msra.mxu0 %v615
    %639 = vmatprep.subr.bf16.mxu0 0
    %640 = vmatpush1.bf16.msra.mxu0 %v616
    %641 = vmatprep.subr.bf16.mxu0 0
    %642 = vmatpush1.bf16.msra.mxu0 0
    %643 = vmatprep.subr.bf16.mxu0 0
    %644 = vmatpush1.bf16.msra.mxu0 0
    %645 = vmatprep.subr.bf16.mxu0 0
    %646 = vmatpush1.bf16.msra.mxu0 0
    %647 = vmatprep.subr.bf16.mxu0 0
    %648 = vmatpush1.bf16.msra.mxu0 0
    %649 = vmatprep.subr.bf16.mxu0 0
    %650 = vmatpush1.bf16.msra.mxu0 0
    %651 = vmatprep.subr.bf16.mxu0 0
    %652 = vmatpush1.bf16.msra.mxu0 0
    %653 = vmatprep.subr.bf16.mxu0 0
    %654 = vmatpush1.bf16.msra.mxu0 0
    %655 = vmatprep.subr.bf16.mxu0 0
    %656 = vmatpush1.bf16.msra.mxu0 0
    %657 = vmatprep.mubr.bf16.mxu0 0
    %658 = vmatmul.mubr.bf16.gmra.mrb[0].mxu0 %v556
    %v659 = vpop.f32.mrb[0].mxu0
    %v660 = vadd.f32 %v576, %v659
    %v661 = vpop.f32.mrb[0].mxu0
    %v662 = vpop.f32.mrb[0].mxu0
    %v663 = vpop.f32.mrb[0].mxu0
    %664 = vdwg.mxu0
    %665 = vst [vmem:[#allocation2] sm:$0xff] %v660
    // Predicated region
    $region30: #{_forward_impl.1} parent=1 // pred_check
      _
    $region31: #{_forward_impl.1} parent=1 // pred_check_branch
      %667 = sbr.rel (0) target = $region33
    $region32: #{_forward_impl.1} parent=1 // pred_region
      %s669 = ssub.s32 128, 128
      %670 = vsyncadd [#allocation3], %s669
      %s672 = sshll.u32 [#allocation2], 4
      %s673 = int_to_ptr.vmem [resolvable:$true] %s672
      %675 = dma.vmem_to_hbm [thread:$0]  %s673, 128, %s7, [#allocation3]
    $region33: #{_forward_impl.1} parent=1 // pred_fallthru
      _
    // Predicated region
    $region34: #{_forward_impl.1} parent=1 // pred_check
      _
    $region35: #{_forward_impl.1} parent=1 // pred_check_branch
      %677 = sbr.rel (0) target = $region37
    $region36: #{_forward_impl.1} parent=1 // pred_region
      %678 = dma.done [#allocation3], 128
    $region37: #{_forward_impl.1} parent=1 // pred_fallthru
      _
    %679 = vsyncpa [#allocation3], 1

</llo_original>
